<compile_context>
chip_gen: v7x
topology: tpu7x:2x2x1
jax: 0.10.0
libtpu: 0.0.40
codegen_flags: <defaults>
</compile_context>

<pallas_src>
import functools
import math
from typing import NamedTuple, Tuple

import jax
import jax.numpy as jnp
from jax import lax
from jax.experimental import pallas as pl
from jax.experimental.pallas import tpu as pltpu


# ----------------------------------------------------------------------------
# EfficientNet scaling helpers (same semantics as the torch reference).
# ----------------------------------------------------------------------------
def round_filters(filters, width_coefficient, divisor=8):
    filters = filters * width_coefficient
    new_filters = max(divisor, int(filters + divisor / 2) // divisor * divisor)
    if new_filters < 0.9 * filters:
        new_filters += divisor
    return int(new_filters)


def round_repeats(repeats, depth_coefficient):
    return int(math.ceil(depth_coefficient * repeats))


B0_SETTINGS = [[3, 1, 1, 16, 1, 0.25], [3, 2, 6, 24, 2, 0.25],
               [5, 2, 6, 40, 2, 0.25], [3, 2, 6, 80, 3, 0.25],
               [5, 1, 6, 112, 3, 0.25], [5, 2, 6, 192, 4, 0.25],
               [3, 1, 6, 320, 1, 0.25]]

BN_EPS = 1e-5
STEM_KPAD = 128                      # per-part stem contraction dim padded 27 -> 128
FUSE_PROJ_BUDGET = 12 * 1024 * 1024  # max bf16 weight bytes resident in a fused dw+SE+proj kernel


def pad128(c):
    return ((int(c) + 127) // 128) * 128


def _default_vmem_limit():
    # Generation-aware scoped-VMEM limit (~3/4 of physical), conservative fallback.
    try:
        info = pltpu.get_tpu_info()
        cap = int(getattr(info, "vmem_capacity_bytes", 0) or 0)
        if cap > 0:
            return min(int(cap * 3 // 4), 100 * 1024 * 1024)
    except Exception:
        pass
    return 48 * 1024 * 1024


VMEM_LIMIT = _default_vmem_limit()

_PAR = pltpu.CompilerParams(dimension_semantics=("parallel",),
                            vmem_limit_bytes=VMEM_LIMIT)
_SEQ = pltpu.CompilerParams(dimension_semantics=("arbitrary",),
                            vmem_limit_bytes=VMEM_LIMIT)


def _full_spec(shape):
    nd = len(shape)
    return pl.BlockSpec(shape, lambda *_: (0,) * nd)


# ----------------------------------------------------------------------------
# In-kernel math helpers
# ----------------------------------------------------------------------------
def _bn_cols(y, eps=BN_EPS):
    # Training-mode BatchNorm over the row (M = N*H*W) axis, per column (channel).
    mean = jnp.mean(y, axis=0, keepdims=True)
    cent = y - mean
    var = jnp.mean(cent * cent, axis=0, keepdims=True)    # biased var (torch training)
    return cent * lax.rsqrt(var + eps)                    # weight=1, bias=0


def _bn_silu_rows(v, eps=BN_EPS):
    # BN over every axis but the last (channel) + SiLU, for N-D accumulators.
    axes = tuple(range(v.ndim - 1))
    mean = jnp.mean(v, axis=axes, keepdims=True)
    cent = v - mean
    var = jnp.mean(cent * cent, axis=axes, keepdims=True)
    y = cent * lax.rsqrt(var + eps)
    return y * jax.nn.sigmoid(y)


def _se_proj_epilogue(yr, yi, n, wse1_ref, wse2_ref, wproj_ref, res, o_ref, fuse_proj):
    """Fused SE (pool->reduce->SiLU->expand->sigmoid gate) + gating (+ projection conv + BN
    (+residual)).  yr/yi are post-BN+SiLU depthwise activations of shape (..., cpad)."""
    cpad = yr.shape[-1]
    m = 1
    for d in yr.shape[:-1]:
        m *= d
    ohow = m // n
    yr2 = yr.reshape(n, ohow, cpad)
    yi2 = yi.reshape(n, ohow, cpad)

    pr = jnp.mean(yr2, axis=1)                                   # (N, cpad)
    pi = jnp.mean(yi2, axis=1)
    p = jnp.concatenate([pr, pi], axis=-1).astype(jnp.bfloat16)  # (N, 2*cpad)
    s = jnp.dot(p, wse1_ref[...], preferred_element_type=jnp.float32)
    s = s * jax.nn.sigmoid(s)                                    # complex SiLU (per part)
    g = jax.nn.sigmoid(jnp.dot(s.astype(jnp.bfloat16), wse2_ref[...],
                               preferred_element_type=jnp.float32))   # (N, 2*cpad) gate
    zr = yr2 * g[:, None, :cpad]
    zi = yi2 * g[:, None, cpad:]

    if fuse_proj:
        z = jnp.concatenate([zr.reshape(m, cpad), zi.reshape(m, cpad)],
                            axis=-1).astype(jnp.bfloat16)        # (M, 2*cpad)
        y = jnp.dot(z, wproj_ref[...], preferred_element_type=jnp.float32)
        y = _bn_cols(y)
        if res is not None:
            y = y + res.astype(jnp.float32)                      # drop_connect=0 -> plain add
        o_ref[...] = y.astype(o_ref.dtype)
    else:
        o_ref[:, :cpad] = zr.reshape(m, cpad).astype(o_ref.dtype)
        o_ref[:, cpad:] = zi.reshape(m, cpad).astype(o_ref.dtype)


# ----------------------------------------------------------------------------
# Pallas kernels
# ----------------------------------------------------------------------------
def _conv_bn_kernel(x_ref, w_ref, o_ref, *, apply_silu):
    # x: (M, 2K) bf16 (grid-invariant full block), w: (2K, TN) bf16 channel tile.
    y = jnp.dot(x_ref[...], w_ref[...], preferred_element_type=jnp.float32)
    y = _bn_cols(y)
    if apply_silu:
        y = y * jax.nn.sigmoid(y)
    o_ref[...] = y.astype(o_ref.dtype)


def _conv_bn_res_kernel(x_ref, w_ref, r_ref, o_ref):
    y = jnp.dot(x_ref[...], w_ref[...], preferred_element_type=jnp.float32)
    y = _bn_cols(y) + r_ref[...].astype(jnp.float32)
    o_ref[...] = y.astype(o_ref.dtype)


def _dw_se_map_kernel(x_ref, wdw_ref, wse1_ref, wse2_ref, *rest,
                      ksize, cpad, fuse_proj, has_residual):
    # Stride-1 depthwise complex conv as KxK shifted VPU FMAs, fused with BN + SiLU + SE
    # (+ projection conv + BN + residual when fuse_proj).
    if fuse_proj:
        if has_residual:
            wproj_ref, res_ref, o_ref = rest
        else:
            wproj_ref, o_ref = rest
            res_ref = None
    else:
        wproj_ref = None
        res_ref = None
        (o_ref,) = rest

    n, hp, wp, _ = x_ref.shape
    oh = hp - ksize + 1
    ow = wp - ksize + 1

    x = x_ref[...].astype(jnp.float32)
    xr_full = x[..., :cpad]                       # lane split hoisted out of the tap loop
    xi_full = x[..., cpad:]
    # Hoist the W-axis (sublane-realigning) shifts: K copies instead of K*K.
    xr_w = [xr_full[:, :, kw:kw + ow, :] for kw in range(ksize)]
    xi_w = [xi_full[:, :, kw:kw + ow, :] for kw in range(ksize)]

    w = wdw_ref[...]
    acc_r = jnp.zeros((n, oh, ow, cpad), jnp.float32)
    acc_i = jnp.zeros((n, oh, ow, cpad), jnp.float32)
    for kh in range(ksize):
        for kw in range(ksize):
            xr = xr_w[kw][:, kh:kh + oh]
            xi = xi_w[kw][:, kh:kh + oh]
            tap = kh * ksize + kw
            wr = w[tap, :cpad]
            wi = w[tap, cpad:]
            acc_r = acc_r + xr * wr - xi * wi
            acc_i = acc_i + xr * wi + xi * wr

    yr = _bn_silu_rows(acc_r)
    yi = _bn_silu_rows(acc_i)
    _se_proj_epilogue(yr, yi, n, wse1_ref, wse2_ref, wproj_ref,
                      None if res_ref is None else res_ref[...],
                      o_ref, fuse_proj)


def _dw_se_col_kernel(p_ref, wdw_ref, wse1_ref, wse2_ref, wproj_ref, o_ref, *, cpad, nbatch):
    # Strided depthwise fallback (im2col patches built in the wrapper) fused with
    # BN + SiLU + SE + projection conv + BN.  Stride!=1 blocks never have a residual.
    p = p_ref[...].astype(jnp.float32)            # (M, KK, 2*cpad)
    w = wdw_ref[...]
    pr, pi = p[..., :cpad], p[..., cpad:]
    wr = w[None, :, :cpad]
    wi = w[None, :, cpad:]
    acc_r = jnp.sum(pr * wr - pi * wi, axis=1)    # (M, cpad)
    acc_i = jnp.sum(pr * wi + pi * wr, axis=1)
    yr = _bn_silu_rows(acc_r)
    yi = _bn_silu_rows(acc_i)
    _se_proj_epilogue(yr, yi, nbatch, wse1_ref, wse2_ref, wproj_ref, None, o_ref, True)


def _pool_fc_mag_kernel(x_ref, w_ref, b_ref, o_ref, *, ncp):
    # Fused global-average-pool -> complex FC (+bias) -> magnitude.
    p = jnp.mean(x_ref[...].astype(jnp.float32), axis=1)         # (N, 2*Chead)
    y = jnp.dot(p.astype(jnp.bfloat16), w_ref[...],
                preferred_element_type=jnp.float32) + b_ref[...]
    yr, yi = y[:, :ncp], y[:, ncp:]
    o_ref[...] = jnp.sqrt(yr * yr + yi * yi)


# ----------------------------------------------------------------------------
# pallas_call wrappers (jitted; cached per shape / static config).
# ----------------------------------------------------------------------------
def _pick_tn(n2):
    # n2 is always a multiple of 256; keep <=1024 per tile or split in two (v7x megacore).
    return n2 if n2 <= 1024 else n2 // 2


@functools.partial(jax.jit, static_argnames=("apply_silu",))
def conv_bn(x, w, apply_silu):
    m, k2 = x.shape
    n2 = w.shape[1]
    tn = _pick_tn(n2)
    kern = functools.partial(_conv_bn_kernel, apply_silu=apply_silu)
    return pl.pallas_call(
        kern,
        grid=(n2 // tn,),
        in_specs=[pl.BlockSpec((m, k2), lambda j: (0, 0)),
                  pl.BlockSpec((k2, tn), lambda j: (0, j))],
        out_specs=pl.BlockSpec((m, tn), lambda j: (0, j)),
        out_shape=jax.ShapeDtypeStruct((m, n2), jnp.bfloat16),
        compiler_params=_PAR,
    )(x, w)


@jax.jit
def conv_bn_res(x, w, res):
    m, k2 = x.shape
    n2 = w.shape[1]
    tn = _pick_tn(n2)
    return pl.pallas_call(
        _conv_bn_res_kernel,
        grid=(n2 // tn,),
        in_specs=[pl.BlockSpec((m, k2), lambda j: (0, 0)),
                  pl.BlockSpec((k2, tn), lambda j: (0, j)),
                  pl.BlockSpec((m, tn), lambda j: (0, j))],
        out_specs=pl.BlockSpec((m, tn), lambda j: (0, j)),
        out_shape=jax.ShapeDtypeStruct((m, n2), jnp.bfloat16),
        compiler_params=_PAR,
    )(x, w, res)


def _dw_map_call(args, ksize, cpad, ncols, fuse_proj, has_residual):
    xp = args[0]
    n, hp, wp, _ = xp.shape
    oh, ow = hp - ksize + 1, wp - ksize + 1
    m = n * oh * ow
    kern = functools.partial(_dw_se_map_kernel, ksize=ksize, cpad=cpad,
                             fuse_proj=fuse_proj, has_residual=has_residual)
    # grid=(1,): training-mode BN (batch stats) + the SE reduction couple the whole batch.
    return pl.pallas_call(
        kern, grid=(1,),
        in_specs=[_full_spec(a.shape) for a in args],
        out_specs=_full_spec((m, ncols)),
        out_shape=jax.ShapeDtypeStruct((m, ncols), jnp.bfloat16),
        compiler_params=_SEQ,
    )(*args)


@functools.partial(jax.jit, static_argnames=("ksize", "cpad"))
def dw_se_map(xp, wdw, wse1, wse2, ksize, cpad):
    return _dw_map_call((xp, wdw, wse1, wse2), ksize, cpad, 2 * cpad, False, False)


@functools.partial(jax.jit, static_argnames=("ksize", "cpad"))
def dw_se_proj_map(xp, wdw, wse1, wse2, wproj, ksize, cpad):
    return _dw_map_call((xp, wdw, wse1, wse2, wproj), ksize, cpad,
                        wproj.shape[1], True, False)


@functools.partial(jax.jit, static_argnames=("ksize", "cpad"))
def dw_se_proj_res_map(xp, wdw, wse1, wse2, wproj, res, ksize, cpad):
    return _dw_map_call((xp, wdw, wse1, wse2, wproj, res), ksize, cpad,
                        wproj.shape[1], True, True)


@functools.partial(jax.jit, static_argnames=("cpad", "nbatch"))
def dw_se_proj_col(p, wdw, wse1, wse2, wproj, cpad, nbatch):
    m = p.shape[0]
    ncols = wproj.shape[1]
    kern = functools.partial(_dw_se_col_kernel, cpad=cpad, nbatch=nbatch)
    return pl.pallas_call(
        kern, grid=(1,),
        in_specs=[_full_spec(a.shape) for a in (p, wdw, wse1, wse2, wproj)],
        out_specs=_full_spec((m, ncols)),
        out_shape=jax.ShapeDtypeStruct((m, ncols), jnp.bfloat16),
        compiler_params=_SEQ,
    )(p, wdw, wse1, wse2, wproj)


@functools.partial(jax.jit, static_argnames=("ncp",))
def pool_fc_mag(x, w, b, ncp):
    n, hw, c2 = x.shape
    kern = functools.partial(_pool_fc_mag_kernel, ncp=ncp)
    return pl.pallas_call(
        kern, grid=(1,),
        in_specs=[_full_spec((n, hw, c2)), _full_spec((c2, 2 * ncp)),
                  _full_spec((1, 2 * ncp))],
        out_specs=_full_spec((n, ncp)),
        out_shape=jax.ShapeDtypeStruct((n, ncp), jnp.float32),
        compiler_params=_SEQ,
    )(x, w, b)


# ----------------------------------------------------------------------------
# Wrapper-side glue (layout only, no heavy compute).
# ----------------------------------------------------------------------------
def _extract_patches(x, ksize, stride, padding):
    n, h, w, c = x.shape
    oh = (h + 2 * padding - ksize) // stride + 1
    ow = (w + 2 * padding - ksize) // stride + 1
    xp = jnp.pad(x, ((0, 0), (padding, padding), (padding, padding), (0, 0)))
    pieces = []
    for kh in range(ksize):
        for kw in range(ksize):
            pieces.append(
                xp[:, kh:kh + (oh - 1) * stride + 1:stride,
                      kw:kw + (ow - 1) * stride + 1:stride, :])
    return jnp.stack(pieces, axis=3), oh, ow        # (N, OH, OW, K*K, C)


# ----------------------------------------------------------------------------
# Static configuration + deterministic parameter construction.
# ----------------------------------------------------------------------------
class BlockCfg(NamedTuple):
    ksize: int
    stride: int
    expansion: int
    in_c: int
    out_c: int
    exp_c: int
    se_c: int
    in_p: int
    out_p: int
    exp_p: int
    se_p: int
    has_residual: bool
    fuse_proj: bool


class NetCfg(NamedTuple):
    stem_c: int
    stem_p: int
    head_c: int
    head_p: int
    num_classes: int
    nc_p: int
    blocks: Tuple[BlockCfg, ...]


def build_config(num_classes=10, width=1.8, depth=2.6):
    stem_c = round_filters(32, width)
    blocks = []
    in_c = stem_c
    for ksize, stride, expansion, base_c, base_n, se_ratio in B0_SETTINGS:
        out_c = round_filters(base_c, width)
        reps = round_repeats(base_n, depth)
        for i in range(reps):
            b_in = in_c if i == 0 else out_c
            b_stride = stride if i == 0 else 1
            exp_c = b_in * expansion
            se_c = max(1, int(b_in * se_ratio))
            in_p, out_p, exp_p, se_p = (pad128(b_in), pad128(out_c),
                                        pad128(exp_c), pad128(se_c))
            has_res = (b_stride == 1 and b_in == out_c)
            # bf16 bytes of SE + projection weights resident in a fused kernel.
            fused_bytes = 2 * ((2 * exp_p) * (2 * out_p) + 2 * (2 * exp_p) * (2 * se_p))
            fuse_proj = (b_stride != 1) or (fused_bytes <= FUSE_PROJ_BUDGET)
            blocks.append(BlockCfg(ksize, b_stride, expansion, b_in, out_c, exp_c, se_c,
                                   in_p, out_p, exp_p, se_p, has_res, fuse_proj))
            in_c = out_c
    head_c = round_filters(1280, width)
    return NetCfg(stem_c, pad128(stem_c), head_c, pad128(head_c),
                  num_classes, pad128(num_classes), tuple(blocks))


def _kaiming(key, shape, fan_in):
    return jax.random.normal(key, shape, jnp.float32) * jnp.sqrt(2.0 / fan_in)


def pack_conv_weight(wr, wi, k_log, k_pad, n_log, n_pad, dtype=jnp.bfloat16):
    # Packed complex weight: [xr | xi] @ [[wr, wi], [-wi, wr]] = [rr-ii | ri+ir]
    w = jnp.zeros((2 * k_pad, 2 * n_pad), jnp.float32)
    w = w.at[:k_log, :n_log].set(wr)
    w = w.at[:k_log, n_pad:n_pad + n_log].set(wi)
    w = w.at[k_pad:k_pad + k_log, :n_log].set(-wi)
    w = w.at[k_pad:k_pad + k_log, n_pad:n_pad + n_log].set(wr)
    return w.astype(dtype)


def pack_dw_weight(wr, wi, c_log, c_pad):
    kk = wr.shape[0]
    w = jnp.zeros((kk, 2 * c_pad), jnp.float32)
    w = w.at[:, :c_log].set(wr)
    w = w.at[:, c_pad:c_pad + c_log].set(wi)
    return w


def build_params(key, cfg: NetCfg):
    keys = iter(jax.random.split(key, 1024))
    nxt = lambda: next(keys)
    wt = {}

    wr = _kaiming(nxt(), (27, cfg.stem_c), 27)
    wi = _kaiming(nxt(), (27, cfg.stem_c), 27)
    wt["w_stem"] = pack_conv_weight(wr, wi, 27, STEM_KPAD, cfg.stem_c, cfg.stem_p)

    blocks = []
    for bc in cfg.blocks:
        bw = {}
        if bc.expansion != 1:
            wr = _kaiming(nxt(), (bc.in_c, bc.exp_c), bc.in_c)
            wi = _kaiming(nxt(), (bc.in_c, bc.exp_c), bc.in_c)
            bw["w_expand"] = pack_conv_weight(wr, wi, bc.in_c, bc.in_p, bc.exp_c, bc.exp_p)
        kk = bc.ksize * bc.ksize
        wr = _kaiming(nxt(), (kk, bc.exp_c), kk)
        wi = _kaiming(nxt(), (kk, bc.exp_c), kk)
        bw["w_dw"] = pack_dw_weight(wr, wi, bc.exp_c, bc.exp_p)
        wr = _kaiming(nxt(), (bc.exp_c, bc.se_c), bc.exp_c)
        wi = _kaiming(nxt(), (bc.exp_c, bc.se_c), bc.exp_c)
        bw["w_se1"] = pack_conv_weight(wr, wi, bc.exp_c, bc.exp_p, bc.se_c, bc.se_p)
        wr = _kaiming(nxt(), (bc.se_c, bc.exp_c), bc.se_c)
        wi = _kaiming(nxt(), (bc.se_c, bc.exp_c), bc.se_c)
        bw["w_se2"] = pack_conv_weight(wr, wi, bc.se_c, bc.se_p, bc.exp_c, bc.exp_p)
        wr = _kaiming(nxt(), (bc.exp_c, bc.out_c), bc.exp_c)
        wi = _kaiming(nxt(), (bc.exp_c, bc.out_c), bc.exp_c)
        bw["w_proj"] = pack_conv_weight(wr, wi, bc.exp_c, bc.exp_p, bc.out_c, bc.out_p)
        blocks.append(bw)
    wt["blocks"] = blocks

    head_in = cfg.blocks[-1].out_c
    head_in_p = cfg.blocks[-1].out_p
    wr = _kaiming(nxt(), (head_in, cfg.head_c), head_in)
    wi = _kaiming(nxt(), (head_in, cfg.head_c), head_in)
    wt["w_head"] = pack_conv_weight(wr, wi, head_in, head_in_p, cfg.head_c, cfg.head_p)

    wr = _kaiming(nxt(), (cfg.head_c, cfg.num_classes), cfg.head_c)
    wi = _kaiming(nxt(), (cfg.head_c, cfg.num_classes), cfg.head_c)
    wt["w_fc"] = pack_conv_weight(wr, wi, cfg.head_c, cfg.head_p, cfg.num_classes, cfg.nc_p)
    bound = 1.0 / math.sqrt(cfg.head_c)
    br = jax.random.uniform(nxt(), (cfg.num_classes,), jnp.float32, -bound, bound)
    bi = jax.random.uniform(nxt(), (cfg.num_classes,), jnp.float32, -bound, bound)
    b = jnp.zeros((1, 2 * cfg.nc_p), jnp.float32)
    b = b.at[0, :cfg.num_classes].set(br)
    b = b.at[0, cfg.nc_p:cfg.nc_p + cfg.num_classes].set(bi)
    wt["b_fc"] = b
    return wt


# ----------------------------------------------------------------------------
# Forward pass
# ----------------------------------------------------------------------------
def mbconv_forward(bc: BlockCfg, wt, x, n, h, w):
    res = x
    if bc.expansion != 1:
        x = conv_bn(x, wt["w_expand"], apply_silu=True)

    ep = bc.exp_p
    k, s = bc.ksize, bc.stride
    pad = k // 2
    x4 = x.reshape(n, h, w, 2 * ep)

    if s == 1:
        xp = jnp.pad(x4, ((0, 0), (pad, pad), (pad, pad), (0, 0)))
        if bc.fuse_proj:
            if bc.has_residual:
                y = dw_se_proj_res_map(xp, wt["w_dw"], wt["w_se1"], wt["w_se2"],
                                       wt["w_proj"], res, ksize=k, cpad=ep)
            else:
                y = dw_se_proj_map(xp, wt["w_dw"], wt["w_se1"], wt["w_se2"],
                                   wt["w_proj"], ksize=k, cpad=ep)
        else:
            # Very wide (stage-7) blocks: SE stays fused with the depthwise conv, but the
            # projection runs as a channel-tiled conv kernel to respect the VMEM budget.
            g = dw_se_map(xp, wt["w_dw"], wt["w_se1"], wt["w_se2"], ksize=k, cpad=ep)
            if bc.has_residual:
                y = conv_bn_res(g, wt["w_proj"], res)
            else:
                y = conv_bn(g, wt["w_proj"], apply_silu=False)
        oh, ow = h, w
    else:
        # TODO(synk): stride-2 depthwise (4 of 45 blocks) uses a wrapper-side im2col fallback;
        # an in-kernel strided-window load would remove this last small patch blow-up.
        patches, oh, ow = _extract_patches(x4, k, s, pad)
        y = dw_se_proj_col(patches.reshape(n * oh * ow, k * k, 2 * ep),
                           wt["w_dw"], wt["w_se1"], wt["w_se2"], wt["w_proj"],
                           cpad=ep, nbatch=n)
    return y, oh, ow


def forward(cfg: NetCfg, wt, x_r, x_i):
    # NCHW -> NHWC (internal kernel layout), bf16 activations throughout.
    xr = jnp.transpose(x_r, (0, 2, 3, 1)).astype(jnp.bfloat16)
    xi = jnp.transpose(x_i, (0, 2, 3, 1)).astype(jnp.bfloat16)
    n = xr.shape[0]

    # Stem: complex 3x3/s2/p1 conv (im2col, 27 taps padded to 128 per part) + BN + SiLU.
    pr, oh, ow = _extract_patches(xr, 3, 2, 1)
    pi, _, _ = _extract_patches(xi, 3, 2, 1)
    m = n * oh * ow
    pr = jnp.pad(pr.reshape(m, 27), ((0, 0), (0, STEM_KPAD - 27)))
    pi = jnp.pad(pi.reshape(m, 27), ((0, 0), (0, STEM_KPAD - 27)))
    lhs = jnp.concatenate([pr, pi], axis=1).astype(jnp.bfloat16)
    x = conv_bn(lhs, wt["w_stem"], apply_silu=True)
    h, w = oh, ow

    for bc, bwt in zip(cfg.blocks, wt["blocks"]):
        x, h, w = mbconv_forward(bc, bwt, x, n, h, w)

    # Head: complex 1x1 conv + BN + SiLU (fused).
    x = conv_bn(x, wt["w_head"], apply_silu=True)

    # TODO(synk): ComplexDropoutTensorParallel treated as inference-mode identity.

    # AdaptiveAvgPool2d((1,1)) + complex FC (+bias) + magnitude, one fused kernel.
    x3 = x.reshape(n, h * w, 2 * cfg.head_p)
    mag = pool_fc_mag(x3, wt["w_fc"], wt["b_fc"], ncp=cfg.nc_p)
    return mag[:, :cfg.num_classes]


# ----------------------------------------------------------------------------
if __name__ == "__main__":
    key = jax.random.PRNGKey(0)
    kparam, kr, ki = jax.random.split(key, 3)
    cfg = build_config(num_classes=10)
    params = build_params(kparam, cfg)

    # Complex input in PyTorch NCHW convention: real & imag parts of shape (2, 3, 32, 32).
    x_r = jax.random.normal(kr, (2, 3, 32, 32), jnp.float32)
    x_i = jax.random.normal(ki, (2, 3, 32, 32), jnp.float32)

    out = forward(cfg, params, x_r, x_i)
    out = jax.block_until_ready(out)
    assert out.shape == (2, 10) and out.dtype == jnp.float32
    assert bool(jnp.all(jnp.isfinite(out)))
    print("KERNEL_OK")
</pallas_src>

<mosaic_0001>
module attributes {stable_mosaic.version = 11 : i64} {
  func.func @_conv_bn_kernel(%arg0: i32, %arg1: memref<512x256xbf16, #tpu.memory_space<vmem>>, %arg2: memref<256x256xbf16, #tpu.memory_space<vmem>>, %arg3: memref<512x256xbf16, #tpu.memory_space<vmem>>) attributes {dimension_semantics = [#tpu.dimension_semantics<parallel>], iteration_bounds = array<i64: 1>, scalar_prefetch = 0 : i64, scratch_operands = 0 : i64, tpu.core_type = #tpu.core_type<tc>, window_params = [{pipeline_mode = #tpu.pipeline_mode<synchronous>, transform_indices = @transform_0, window_bounds = array<i64: 512, 256>}, {transform_indices = @transform_1, window_bounds = array<i64: 256, 256>}, {transform_indices = @transform_2, window_bounds = array<i64: 512, 256>}]} {
    %c0 = arith.constant 0 : index
    %c0_0 = arith.constant 0 : index
    %0 = vector.load %arg1[%c0, %c0_0] : memref<512x256xbf16, #tpu.memory_space<vmem>>, vector<512x256xbf16>
    %c0_1 = arith.constant 0 : index
    %c0_2 = arith.constant 0 : index
    %1 = vector.load %arg2[%c0_1, %c0_2] : memref<256x256xbf16, #tpu.memory_space<vmem>>, vector<256x256xbf16>
    %cst = arith.constant dense<0.000000e+00> : vector<512x256xf32>
    %2 = tpu.matmul %0, %1, %cst {dimension_numbers = #tpu.dot_dimension_numbers<[1], [0], [0], [1], [0, 0, 1, 1], [], []>} : vector<512x256xbf16>, vector<256x256xbf16>, vector<512x256xf32> -> vector<512x256xf32>
    %cst_3 = arith.constant dense<0.000000e+00> : vector<256xf32>
    %3 = vector.multi_reduction <add>, %2, %cst_3 [0] : vector<512x256xf32> to vector<256xf32>
    %4 = vector.shape_cast %3 : vector<256xf32> to vector<1x256xf32>
    %cst_4 = arith.constant 5.120000e+02 : f32
    %5 = vector.broadcast %cst_4 : f32 to vector<1x256xf32>
    %6 = arith.divf %4, %5 : vector<1x256xf32>
    %7 = vector.broadcast %6 : vector<1x256xf32> to vector<512x256xf32>
    %8 = arith.subf %2, %7 : vector<512x256xf32>
    %9 = arith.mulf %8, %8 : vector<512x256xf32>
    %cst_5 = arith.constant dense<0.000000e+00> : vector<256xf32>
    %10 = vector.multi_reduction <add>, %9, %cst_5 [0] : vector<512x256xf32> to vector<256xf32>
    %11 = vector.shape_cast %10 : vector<256xf32> to vector<1x256xf32>
    %cst_6 = arith.constant 5.120000e+02 : f32
    %12 = vector.broadcast %cst_6 : f32 to vector<1x256xf32>
    %13 = arith.divf %11, %12 : vector<1x256xf32>
    %cst_7 = arith.constant 9.99999974E-6 : f32
    %14 = vector.broadcast %cst_7 : f32 to vector<1x256xf32>
    %15 = arith.addf %13, %14 : vector<1x256xf32>
    %16 = math.rsqrt %15 : vector<1x256xf32>
    %17 = vector.broadcast %16 : vector<1x256xf32> to vector<512x256xf32>
    %18 = arith.mulf %8, %17 : vector<512x256xf32>
    %19 = arith.negf %18 : vector<512x256xf32>
    %20 = math.exp %19 : vector<512x256xf32>
    %cst_8 = arith.constant 1.000000e+00 : f32
    %21 = vector.broadcast %cst_8 : f32 to vector<512x256xf32>
    %22 = arith.addf %21, %20 : vector<512x256xf32>
    %23 = arith.divf %21, %22 : vector<512x256xf32>
    %24 = arith.mulf %18, %23 : vector<512x256xf32>
    %25 = arith.truncf %24 : vector<512x256xf32> to vector<512x256xbf16>
    %c0_9 = arith.constant 0 : index
    %c0_10 = arith.constant 0 : index
    %26 = vector.load %arg3[%c0_9, %c0_10] : memref<512x256xbf16, #tpu.memory_space<vmem>>, vector<512x256xbf16>
    tpu.vector_store %arg3[%c0_9, %c0_10], %25 {strides = array<i32>} : memref<512x256xbf16, #tpu.memory_space<vmem>>, vector<512x256xbf16>,
    return
  }
  func.func @transform_0(%arg0: i32) -> (i32, i32) {
    %c0_i32 = arith.constant 0 : i32
    %c0_i32_0 = arith.constant 0 : i32
    %c0_i32_1 = arith.constant 0 : i32
    return %c0_i32, %c0_i32_0 : i32, i32
  }
  func.func @transform_1(%arg0: i32) -> (i32, i32) {
    %c0_i32 = arith.constant 0 : i32
    %c0_i32_0 = arith.constant 0 : i32
    return %c0_i32, %arg0 : i32, i32
  }
  func.func @transform_2(%arg0: i32) -> (i32, i32) {
    %c0_i32 = arith.constant 0 : i32
    %c0_i32_0 = arith.constant 0 : i32
    return %c0_i32, %arg0 : i32, i32
  }
}

</mosaic_0001>

<llo_original>
// kernel: conv_bn.1
$region0: #{conv_bn.1}
  #allocation0 [shape = 'u32[]', space=smem, size = 0x4, offset = 0x4, fixed_abs, tag = 'smem constant byte address 0x4 - core index']
  #allocation1 [shape = 'u32[144,128]{1,0:T(1,128)}', space=vmem, size = 0x12000, scoped, tag = 'internal scratch']
  %s0 = inlined_call_operand.hbm [shape: bf16[512,256], index: 0, kind: input, shape index: {}]
  %s1 = inlined_call_operand.hbm [shape: bf16[256,256], index: 1, kind: input, shape index: {}]
  %s2 = inlined_call_operand.hbm [shape: bf16[512,256], index: 2, kind: output, shape index: {}]
  %s3 = sld [smem:[#allocation0]]
  $region26: #{conv_bn.1} parent=0
    _
  %s5 = ssub.s32 1, %s3
  %s6 = scalar_select 0, %s5, %s3
  $region1: #{conv_bn.1} parent=0
    #allocation2 [shape = 'u8[262144]{0}', space=vmem, size = 0x40000, scoped, tag = 'input window, operand 0, single buffered']
    #allocation3 [shape = 's32[1]{0}', space=sflag, size = 0x4, scoped, tag = 'scoped memory for conv_bn.1']
    #allocation4 [shape = 's32[1]{0}', space=sflag, size = 0x4, scoped, tag = 'scoped memory for conv_bn.1']
    #allocation5 [shape = 'u8[131072]{0}', space=vmem, size = 0x20000, scoped, tag = 'input window, operand 1, single buffered']
    #allocation6 [shape = 's32[1]{0}', space=sflag, size = 0x4, scoped, tag = 'scoped memory for conv_bn.1']
    #allocation7 [shape = 'u8[262144]{0}', space=vmem, size = 0x40000, scoped, tag = 'output window, operand 0, single buffered']
    %7 = vsyncpa [#allocation3], 0
    %8 = vsyncpa [#allocation6], 0
    %9 = vsyncpa [#allocation4], 0
    // Predicated region
    $region2: #{conv_bn.1} parent=1 // pred_check
      _
    $region3: #{conv_bn.1} parent=1 // pred_check_branch
      %11 = sbr.rel (0) target = $region5
    $region4: #{conv_bn.1} parent=1 // pred_region
      %s13 = ssub.s32 8192, 8192
      %14 = vsyncadd [#allocation3], %s13
      %s15 = sshll.u32 [#allocation2], 4
      %s16 = int_to_ptr.vmem [resolvable:$true] %s15
      %21 = dma.hbm_to_vmem [thread:$0]  %s0, 8192, %s16, [#allocation3], 128, 128, 8
    $region5: #{conv_bn.1} parent=1 // pred_fallthru
      _
    // Predicated region
    $region6: #{conv_bn.1} parent=1 // pred_check
      _
    $region7: #{conv_bn.1} parent=1 // pred_check_branch
      %23 = sbr.rel (0) target = $region9
    $region8: #{conv_bn.1} parent=1 // pred_region
      %s25 = ssub.s32 4096, 4096
      %26 = vsyncadd [#allocation6], %s25
      %s27 = sshll.u32 [#allocation5], 4
      %s28 = int_to_ptr.vmem [resolvable:$true] %s27
      %33 = dma.hbm_to_vmem [thread:$0]  %s1, 4096, %s28, [#allocation6], 128, 128, 8
    $region9: #{conv_bn.1} parent=1 // pred_fallthru
      _
    // Predicated region
    $region10: #{conv_bn.1} parent=1 // pred_check
      _
    $region11: #{conv_bn.1} parent=1 // pred_check_branch
      %35 = sbr.rel (0) target = $region13
    $region12: #{conv_bn.1} parent=1 // pred_region
      %36 = dma.done [#allocation3], 8192
    $region13: #{conv_bn.1} parent=1 // pred_fallthru
      _
    // Predicated region
    $region14: #{conv_bn.1} parent=1 // pred_check
      _
    $region15: #{conv_bn.1} parent=1 // pred_check_branch
      %38 = sbr.rel (0) target = $region17
    $region16: #{conv_bn.1} parent=1 // pred_region
      %39 = dma.done [#allocation6], 4096
    $region17: #{conv_bn.1} parent=1 // pred_fallthru
      _
    %v40 = vld [vmem:[#allocation2] sm:$0xff]
    %v41 = vld [vmem:[#allocation2 + $0x8] sm:$0xff]
    %v42 = vld [vmem:[#allocation2 + $0x10] sm:$0xff]
    %v43 = vld [vmem:[#allocation2 + $0x18] sm:$0xff]
    %v44 = vld [vmem:[#allocation2 + $0x20] sm:$0xff]
    %v45 = vld [vmem:[#allocation2 + $0x28] sm:$0xff]
    %v46 = vld [vmem:[#allocation2 + $0x30] sm:$0xff]
    %v47 = vld [vmem:[#allocation2 + $0x38] sm:$0xff]
    %v48 = vld [vmem:[#allocation2 + $0x40] sm:$0xff]
    %v49 = vld [vmem:[#allocation2 + $0x48] sm:$0xff]
    %v50 = vld [vmem:[#allocation2 + $0x50] sm:$0xff]
    %v51 = vld [vmem:[#allocation2 + $0x58] sm:$0xff]
    %v52 = vld [vmem:[#allocation2 + $0x60] sm:$0xff]
    %v53 = vld [vmem:[#allocation2 + $0x68] sm:$0xff]
    %v54 = vld [vmem:[#allocation2 + $0x70] sm:$0xff]
    %v55 = vld [vmem:[#allocation2 + $0x78] sm:$0xff]
    %v56 = vld [vmem:[#allocation2 + $0x80] sm:$0xff]
    %v57 = vld [vmem:[#allocation2 + $0x88] sm:$0xff]
    %v58 = vld [vmem:[#allocation2 + $0x90] sm:$0xff]
    %v59 = vld [vmem:[#allocation2 + $0x98] sm:$0xff]
    %v60 = vld [vmem:[#allocation2 + $0xa0] sm:$0xff]
    %v61 = vld [vmem:[#allocation2 + $0xa8] sm:$0xff]
    %v62 = vld [vmem:[#allocation2 + $0xb0] sm:$0xff]
    %v63 = vld [vmem:[#allocation2 + $0xb8] sm:$0xff]
    %v64 = vld [vmem:[#allocation2 + $0xc0] sm:$0xff]
    %v65 = vld [vmem:[#allocation2 + $0xc8] sm:$0xff]
    %v66 = vld [vmem:[#allocation2 + $0xd0] sm:$0xff]
    %v67 = vld [vmem:[#allocation2 + $0xd8] sm:$0xff]
    %v68 = vld [vmem:[#allocation2 + $0xe0] sm:$0xff]
    %v69 = vld [vmem:[#allocation2 + $0xe8] sm:$0xff]
    %v70 = vld [vmem:[#allocation2 + $0xf0] sm:$0xff]
    %v71 = vld [vmem:[#allocation2 + $0xf8] sm:$0xff]
    %v72 = vld [vmem:[#allocation2 + $0x100] sm:$0xff]
    %v73 = vld [vmem:[#allocation2 + $0x108] sm:$0xff]
    %v74 = vld [vmem:[#allocation2 + $0x110] sm:$0xff]
    %v75 = vld [vmem:[#allocation2 + $0x118] sm:$0xff]
    %v76 = vld [vmem:[#allocation2 + $0x120] sm:$0xff]
    %v77 = vld [vmem:[#allocation2 + $0x128] sm:$0xff]
    %v78 = vld [vmem:[#allocation2 + $0x130] sm:$0xff]
    %v79 = vld [vmem:[#allocation2 + $0x138] sm:$0xff]
    %v80 = vld [vmem:[#allocation2 + $0x140] sm:$0xff]
    %v81 = vld [vmem:[#allocation2 + $0x148] sm:$0xff]
    %v82 = vld [vmem:[#allocation2 + $0x150] sm:$0xff]
    %v83 = vld [vmem:[#allocation2 + $0x158] sm:$0xff]
    %v84 = vld [vmem:[#allocation2 + $0x160] sm:$0xff]
    %v85 = vld [vmem:[#allocation2 + $0x168] sm:$0xff]
    %v86 = vld [vmem:[#allocation2 + $0x170] sm:$0xff]
    %v87 = vld [vmem:[#allocation2 + $0x178] sm:$0xff]
    %v88 = vld [vmem:[#allocation2 + $0x180] sm:$0xff]
    %v89 = vld [vmem:[#allocation2 + $0x188] sm:$0xff]
    %v90 = vld [vmem:[#allocation2 + $0x190] sm:$0xff]
    %v91 = vld [vmem:[#allocation2 + $0x198] sm:$0xff]
    %v92 = vld [vmem:[#allocation2 + $0x1a0] sm:$0xff]
    %v93 = vld [vmem:[#allocation2 + $0x1a8] sm:$0xff]
    %v94 = vld [vmem:[#allocation2 + $0x1b0] sm:$0xff]
    %v95 = vld [vmem:[#allocation2 + $0x1b8] sm:$0xff]
    %v96 = vld [vmem:[#allocation2 + $0x1c0] sm:$0xff]
    %v97 = vld [vmem:[#allocation2 + $0x1c8] sm:$0xff]
    %v98 = vld [vmem:[#allocation2 + $0x1d0] sm:$0xff]
    %v99 = vld [vmem:[#allocation2 + $0x1d8] sm:$0xff]
    %v100 = vld [vmem:[#allocation2 + $0x1e0] sm:$0xff]
    %v101 = vld [vmem:[#allocation2 + $0x1e8] sm:$0xff]
    %v102 = vld [vmem:[#allocation2 + $0x1f0] sm:$0xff]
    %v103 = vld [vmem:[#allocation2 + $0x1f8] sm:$0xff]
    %v104 = vld [vmem:[#allocation5] sm:$0xff]
    %v105 = vld [vmem:[#allocation5 + $0x8] sm:$0xff]
    %v106 = vld [vmem:[#allocation5 + $0x10] sm:$0xff]
    %v107 = vld [vmem:[#allocation5 + $0x18] sm:$0xff]
    %v108 = vld [vmem:[#allocation5 + $0x20] sm:$0xff]
    %v109 = vld [vmem:[#allocation5 + $0x28] sm:$0xff]
    %v110 = vld [vmem:[#allocation5 + $0x30] sm:$0xff]
    %v111 = vld [vmem:[#allocation5 + $0x38] sm:$0xff]
    %v112 = vld [vmem:[#allocation5 + $0x40] sm:$0xff]
    %v113 = vld [vmem:[#allocation5 + $0x48] sm:$0xff]
    %v114 = vld [vmem:[#allocation5 + $0x50] sm:$0xff]
    %v115 = vld [vmem:[#allocation5 + $0x58] sm:$0xff]
    %v116 = vld [vmem:[#allocation5 + $0x60] sm:$0xff]
    %v117 = vld [vmem:[#allocation5 + $0x68] sm:$0xff]
    %v118 = vld [vmem:[#allocation5 + $0x70] sm:$0xff]
    %v119 = vld [vmem:[#allocation5 + $0x78] sm:$0xff]
    %v120 = vld [vmem:[#allocation5 + $0x80] sm:$0xff]
    %v121 = vld [vmem:[#allocation5 + $0x88] sm:$0xff]
    %v122 = vld [vmem:[#allocation5 + $0x90] sm:$0xff]
    %v123 = vld [vmem:[#allocation5 + $0x98] sm:$0xff]
    %v124 = vld [vmem:[#allocation5 + $0xa0] sm:$0xff]
    %v125 = vld [vmem:[#allocation5 + $0xa8] sm:$0xff]
    %v126 = vld [vmem:[#allocation5 + $0xb0] sm:$0xff]
    %v127 = vld [vmem:[#allocation5 + $0xb8] sm:$0xff]
    %v128 = vld [vmem:[#allocation5 + $0xc0] sm:$0xff]
    %v129 = vld [vmem:[#allocation5 + $0xc8] sm:$0xff]
    %v130 = vld [vmem:[#allocation5 + $0xd0] sm:$0xff]
    %v131 = vld [vmem:[#allocation5 + $0xd8] sm:$0xff]
    %v132 = vld [vmem:[#allocation5 + $0xe0] sm:$0xff]
    %v133 = vld [vmem:[#allocation5 + $0xe8] sm:$0xff]
    %v134 = vld [vmem:[#allocation5 + $0xf0] sm:$0xff]
    %v135 = vld [vmem:[#allocation5 + $0xf8] sm:$0xff]
    %v200 = vunpack.c.l.b16 %v40
    %v201 = vunpack.c.h.b16 %v40
    %v202 = vunpack.c.l.b16 %v41
    %v203 = vunpack.c.h.b16 %v41
    %v204 = vunpack.c.l.b16 %v42
    %v205 = vunpack.c.h.b16 %v42
    %v206 = vunpack.c.l.b16 %v43
    %v207 = vunpack.c.h.b16 %v43
    %v208 = vunpack.c.l.b16 %v44
    %v209 = vunpack.c.h.b16 %v44
    %v210 = vunpack.c.l.b16 %v45
    %v211 = vunpack.c.h.b16 %v45
    %v212 = vunpack.c.l.b16 %v46
    %v213 = vunpack.c.h.b16 %v46
    %v214 = vunpack.c.l.b16 %v47
    %v215 = vunpack.c.h.b16 %v47
    %v216 = vunpack.c.l.b16 %v48
    %v217 = vunpack.c.h.b16 %v48
    %v218 = vunpack.c.l.b16 %v49
    %v219 = vunpack.c.h.b16 %v49
    %v220 = vunpack.c.l.b16 %v50
    %v221 = vunpack.c.h.b16 %v50
    %v222 = vunpack.c.l.b16 %v51
    %v223 = vunpack.c.h.b16 %v51
    %v224 = vunpack.c.l.b16 %v52
    %v225 = vunpack.c.h.b16 %v52
    %v226 = vunpack.c.l.b16 %v53
    %v227 = vunpack.c.h.b16 %v53
    %v228 = vunpack.c.l.b16 %v54
    %v229 = vunpack.c.h.b16 %v54
    %v230 = vunpack.c.l.b16 %v55
    %v231 = vunpack.c.h.b16 %v55
    %v232 = vunpack.c.l.b16 %v56
    %v233 = vunpack.c.h.b16 %v56
    %v234 = vunpack.c.l.b16 %v57
    %v235 = vunpack.c.h.b16 %v57
    %v236 = vunpack.c.l.b16 %v58
    %v237 = vunpack.c.h.b16 %v58
    %v238 = vunpack.c.l.b16 %v59
    %v239 = vunpack.c.h.b16 %v59
    %v240 = vunpack.c.l.b16 %v60
    %v241 = vunpack.c.h.b16 %v60
    %v242 = vunpack.c.l.b16 %v61
    %v243 = vunpack.c.h.b16 %v61
    %v244 = vunpack.c.l.b16 %v62
    %v245 = vunpack.c.h.b16 %v62
    %v246 = vunpack.c.l.b16 %v63
    %v247 = vunpack.c.h.b16 %v63
    %v248 = vunpack.c.l.b16 %v64
    %v249 = vunpack.c.h.b16 %v64
    %v250 = vunpack.c.l.b16 %v65
    %v251 = vunpack.c.h.b16 %v65
    %v252 = vunpack.c.l.b16 %v66
    %v253 = vunpack.c.h.b16 %v66
    %v254 = vunpack.c.l.b16 %v67
    %v255 = vunpack.c.h.b16 %v67
    %v256 = vunpack.c.l.b16 %v68
    %v257 = vunpack.c.h.b16 %v68
    %v258 = vunpack.c.l.b16 %v69
    %v259 = vunpack.c.h.b16 %v69
    %v260 = vunpack.c.l.b16 %v70
    %v261 = vunpack.c.h.b16 %v70
    %v262 = vunpack.c.l.b16 %v71
    %v263 = vunpack.c.h.b16 %v71
    %v264 = vunpack.c.l.b16 %v72
    %v265 = vunpack.c.h.b16 %v72
    %v266 = vunpack.c.l.b16 %v73
    %v267 = vunpack.c.h.b16 %v73
    %v268 = vunpack.c.l.b16 %v74
    %v269 = vunpack.c.h.b16 %v74
    %v270 = vunpack.c.l.b16 %v75
    %v271 = vunpack.c.h.b16 %v75
    %v272 = vunpack.c.l.b16 %v76
    %v273 = vunpack.c.h.b16 %v76
    %v274 = vunpack.c.l.b16 %v77
    %v275 = vunpack.c.h.b16 %v77
    %v276 = vunpack.c.l.b16 %v78
    %v277 = vunpack.c.h.b16 %v78
    %v278 = vunpack.c.l.b16 %v79
    %v279 = vunpack.c.h.b16 %v79
    %v280 = vunpack.c.l.b16 %v80
    %v281 = vunpack.c.h.b16 %v80
    %v282 = vunpack.c.l.b16 %v81
    %v283 = vunpack.c.h.b16 %v81
    %v284 = vunpack.c.l.b16 %v82
    %v285 = vunpack.c.h.b16 %v82
    %v286 = vunpack.c.l.b16 %v83
    %v287 = vunpack.c.h.b16 %v83
    %v288 = vunpack.c.l.b16 %v84
    %v289 = vunpack.c.h.b16 %v84
    %v290 = vunpack.c.l.b16 %v85
    %v291 = vunpack.c.h.b16 %v85
    %v292 = vunpack.c.l.b16 %v86
    %v293 = vunpack.c.h.b16 %v86
    %v294 = vunpack.c.l.b16 %v87
    %v295 = vunpack.c.h.b16 %v87
    %v296 = vunpack.c.l.b16 %v88
    %v297 = vunpack.c.h.b16 %v88
    %v298 = vunpack.c.l.b16 %v89
    %v299 = vunpack.c.h.b16 %v89
    %v300 = vunpack.c.l.b16 %v90
    %v301 = vunpack.c.h.b16 %v90
    %v302 = vunpack.c.l.b16 %v91
    %v303 = vunpack.c.h.b16 %v91
    %v304 = vunpack.c.l.b16 %v92
    %v305 = vunpack.c.h.b16 %v92
    %v306 = vunpack.c.l.b16 %v93
    %v307 = vunpack.c.h.b16 %v93
    %v308 = vunpack.c.l.b16 %v94
    %v309 = vunpack.c.h.b16 %v94
    %v310 = vunpack.c.l.b16 %v95
    %v311 = vunpack.c.h.b16 %v95
    %v312 = vunpack.c.l.b16 %v96
    %v313 = vunpack.c.h.b16 %v96
    %v314 = vunpack.c.l.b16 %v97
    %v315 = vunpack.c.h.b16 %v97
    %v316 = vunpack.c.l.b16 %v98
    %v317 = vunpack.c.h.b16 %v98
    %v318 = vunpack.c.l.b16 %v99
    %v319 = vunpack.c.h.b16 %v99
    %v320 = vunpack.c.l.b16 %v100
    %v321 = vunpack.c.h.b16 %v100
    %v322 = vunpack.c.l.b16 %v101
    %v323 = vunpack.c.h.b16 %v101
    %v324 = vunpack.c.l.b16 %v102
    %v325 = vunpack.c.h.b16 %v102
    %v326 = vunpack.c.l.b16 %v103
    %v327 = vunpack.c.h.b16 %v103
    %v328 = vpack.c.b16 %v202, %v200
    %v329 = vpack.c.b16 %v203, %v201
    %v330 = vpack.c.b16 %v206, %v204
    %v331 = vpack.c.b16 %v207, %v205
    %v332 = vpack.c.b16 %v210, %v208
    %v333 = vpack.c.b16 %v211, %v209
    %v334 = vpack.c.b16 %v214, %v212
    %v335 = vpack.c.b16 %v215, %v213
    %v336 = vpack.c.b16 %v218, %v216
    %v337 = vpack.c.b16 %v219, %v217
    %v338 = vpack.c.b16 %v222, %v220
    %v339 = vpack.c.b16 %v223, %v221
    %v340 = vpack.c.b16 %v226, %v224
    %v341 = vpack.c.b16 %v227, %v225
    %v342 = vpack.c.b16 %v230, %v228
    %v343 = vpack.c.b16 %v231, %v229
    %v344 = vpack.c.b16 %v234, %v232
    %v345 = vpack.c.b16 %v235, %v233
    %v346 = vpack.c.b16 %v238, %v236
    %v347 = vpack.c.b16 %v239, %v237
    %v348 = vpack.c.b16 %v242, %v240
    %v349 = vpack.c.b16 %v243, %v241
    %v350 = vpack.c.b16 %v246, %v244
    %v351 = vpack.c.b16 %v247, %v245
    %v352 = vpack.c.b16 %v250, %v248
    %v353 = vpack.c.b16 %v251, %v249
    %v354 = vpack.c.b16 %v254, %v252
    %v355 = vpack.c.b16 %v255, %v253
    %v356 = vpack.c.b16 %v258, %v256
    %v357 = vpack.c.b16 %v259, %v257
    %v358 = vpack.c.b16 %v262, %v260
    %v359 = vpack.c.b16 %v263, %v261
    %v360 = vpack.c.b16 %v266, %v264
    %v361 = vpack.c.b16 %v267, %v265
    %v362 = vpack.c.b16 %v270, %v268
    %v363 = vpack.c.b16 %v271, %v269
    %v364 = vpack.c.b16 %v274, %v272
    %v365 = vpack.c.b16 %v275, %v273
    %v366 = vpack.c.b16 %v278, %v276
    %v367 = vpack.c.b16 %v279, %v277
    %v368 = vpack.c.b16 %v282, %v280
    %v369 = vpack.c.b16 %v283, %v281
    %v370 = vpack.c.b16 %v286, %v284
    %v371 = vpack.c.b16 %v287, %v285
    %v372 = vpack.c.b16 %v290, %v288
    %v373 = vpack.c.b16 %v291, %v289
    %v374 = vpack.c.b16 %v294, %v292
    %v375 = vpack.c.b16 %v295, %v293
    %v376 = vpack.c.b16 %v298, %v296
    %v377 = vpack.c.b16 %v299, %v297
    %v378 = vpack.c.b16 %v302, %v300
    %v379 = vpack.c.b16 %v303, %v301
    %v380 = vpack.c.b16 %v306, %v304
    %v381 = vpack.c.b16 %v307, %v305
    %v382 = vpack.c.b16 %v310, %v308
    %v383 = vpack.c.b16 %v311, %v309
    %v384 = vpack.c.b16 %v314, %v312
    %v385 = vpack.c.b16 %v315, %v313
    %v386 = vpack.c.b16 %v318, %v316
    %v387 = vpack.c.b16 %v319, %v317
    %v388 = vpack.c.b16 %v322, %v320
    %v389 = vpack.c.b16 %v323, %v321
    %v390 = vpack.c.b16 %v326, %v324
    %v391 = vpack.c.b16 %v327, %v325
    %v488 = vunpack.c.l.b16 %v104
    %v489 = vunpack.c.h.b16 %v104
    %v490 = vunpack.c.l.b16 %v105
    %v491 = vunpack.c.h.b16 %v105
    %v492 = vunpack.c.l.b16 %v106
    %v493 = vunpack.c.h.b16 %v106
    %v494 = vunpack.c.l.b16 %v107
    %v495 = vunpack.c.h.b16 %v107
    %v496 = vunpack.c.l.b16 %v108
    %v497 = vunpack.c.h.b16 %v108
    %v498 = vunpack.c.l.b16 %v109
    %v499 = vunpack.c.h.b16 %v109
    %v500 = vunpack.c.l.b16 %v110
    %v501 = vunpack.c.h.b16 %v110
    %v502 = vunpack.c.l.b16 %v111
    %v503 = vunpack.c.h.b16 %v111
    %v504 = vunpack.c.l.b16 %v112
    %v505 = vunpack.c.h.b16 %v112
    %v506 = vunpack.c.l.b16 %v113
    %v507 = vunpack.c.h.b16 %v113
    %v508 = vunpack.c.l.b16 %v114
    %v509 = vunpack.c.h.b16 %v114
    %v510 = vunpack.c.l.b16 %v115
    %v511 = vunpack.c.h.b16 %v115
    %v512 = vunpack.c.l.b16 %v116
    %v513 = vunpack.c.h.b16 %v116
    %v514 = vunpack.c.l.b16 %v117
    %v515 = vunpack.c.h.b16 %v117
    %v516 = vunpack.c.l.b16 %v118
    %v517 = vunpack.c.h.b16 %v118
    %v518 = vunpack.c.l.b16 %v119
    %v519 = vunpack.c.h.b16 %v119
    %v520 = vunpack.c.l.b16 %v120
    %v521 = vunpack.c.h.b16 %v120
    %v522 = vunpack.c.l.b16 %v121
    %v523 = vunpack.c.h.b16 %v121
    %v524 = vunpack.c.l.b16 %v122
    %v525 = vunpack.c.h.b16 %v122
    %v526 = vunpack.c.l.b16 %v123
    %v527 = vunpack.c.h.b16 %v123
    %v528 = vunpack.c.l.b16 %v124
    %v529 = vunpack.c.h.b16 %v124
    %v530 = vunpack.c.l.b16 %v125
    %v531 = vunpack.c.h.b16 %v125
    %v532 = vunpack.c.l.b16 %v126
    %v533 = vunpack.c.h.b16 %v126
    %v534 = vunpack.c.l.b16 %v127
    %v535 = vunpack.c.h.b16 %v127
    %v536 = vunpack.c.l.b16 %v128
    %v537 = vunpack.c.h.b16 %v128
    %v538 = vunpack.c.l.b16 %v129
    %v539 = vunpack.c.h.b16 %v129
    %v540 = vunpack.c.l.b16 %v130
    %v541 = vunpack.c.h.b16 %v130
    %v542 = vunpack.c.l.b16 %v131
    %v543 = vunpack.c.h.b16 %v131
    %v544 = vunpack.c.l.b16 %v132
    %v545 = vunpack.c.h.b16 %v132
    %v546 = vunpack.c.l.b16 %v133
    %v547 = vunpack.c.h.b16 %v133
    %v548 = vunpack.c.l.b16 %v134
    %v549 = vunpack.c.h.b16 %v134
    %v550 = vunpack.c.l.b16 %v135
    %v551 = vunpack.c.h.b16 %v135
    %v552 = vpack.c.b16 %v490, %v488
    %v553 = vpack.c.b16 %v491, %v489
    %v554 = vpack.c.b16 %v494, %v492
    %v555 = vpack.c.b16 %v495, %v493
    %v556 = vpack.c.b16 %v498, %v496
    %v557 = vpack.c.b16 %v499, %v497
    %v558 = vpack.c.b16 %v502, %v500
    %v559 = vpack.c.b16 %v503, %v501
    %v560 = vpack.c.b16 %v506, %v504
    %v561 = vpack.c.b16 %v507, %v505
    %v562 = vpack.c.b16 %v510, %v508
    %v563 = vpack.c.b16 %v511, %v509
    %v564 = vpack.c.b16 %v514, %v512
    %v565 = vpack.c.b16 %v515, %v513
    %v566 = vpack.c.b16 %v518, %v516
    %v567 = vpack.c.b16 %v519, %v517
    %v568 = vpack.c.b16 %v522, %v520
    %v569 = vpack.c.b16 %v523, %v521
    %v570 = vpack.c.b16 %v526, %v524
    %v571 = vpack.c.b16 %v527, %v525
    %v572 = vpack.c.b16 %v530, %v528
    %v573 = vpack.c.b16 %v531, %v529
    %v574 = vpack.c.b16 %v534, %v532
    %v575 = vpack.c.b16 %v535, %v533
    %v576 = vpack.c.b16 %v538, %v536
    %v577 = vpack.c.b16 %v539, %v537
    %v578 = vpack.c.b16 %v542, %v540
    %v579 = vpack.c.b16 %v543, %v541
    %v580 = vpack.c.b16 %v546, %v544
    %v581 = vpack.c.b16 %v547, %v545
    %v582 = vpack.c.b16 %v550, %v548
    %v583 = vpack.c.b16 %v551, %v549
    %616 = vmatprep.subr.bf16.mxu0 %v553
    %617 = vmatpush1.bf16.msra.mxu0 %v552
    %618 = vmatprep.subr.bf16.mxu0 %v555
    %619 = vmatpush1.bf16.msra.mxu0 %v554
    %620 = vmatprep.subr.bf16.mxu0 %v557
    %621 = vmatpush1.bf16.msra.mxu0 %v556
    %622 = vmatprep.subr.bf16.mxu0 %v559
    %623 = vmatpush1.bf16.msra.mxu0 %v558
    %624 = vmatprep.subr.bf16.mxu0 %v561
    %625 = vmatpush1.bf16.msra.mxu0 %v560
    %626 = vmatprep.subr.bf16.mxu0 %v563
    %627 = vmatpush1.bf16.msra.mxu0 %v562
    %628 = vmatprep.subr.bf16.mxu0 %v565
    %629 = vmatpush1.bf16.msra.mxu0 %v564
    %630 = vmatprep.subr.bf16.mxu0 %v567
    %631 = vmatpush1.bf16.msra.mxu0 %v566
    %632 = vmatprep.subr.bf16.mxu0 %v569
    %633 = vmatpush1.bf16.msra.mxu0 %v568
    %634 = vmatprep.subr.bf16.mxu0 %v571
    %635 = vmatpush1.bf16.msra.mxu0 %v570
    %636 = vmatprep.subr.bf16.mxu0 %v573
    %637 = vmatpush1.bf16.msra.mxu0 %v572
    %638 = vmatprep.subr.bf16.mxu0 %v575
    %639 = vmatpush1.bf16.msra.mxu0 %v574
    %640 = vmatprep.subr.bf16.mxu0 %v577
    %641 = vmatpush1.bf16.msra.mxu0 %v576
    %642 = vmatprep.subr.bf16.mxu0 %v579
    %643 = vmatpush1.bf16.msra.mxu0 %v578
    %644 = vmatprep.subr.bf16.mxu0 %v581
    %645 = vmatpush1.bf16.msra.mxu0 %v580
    %646 = vmatprep.subr.bf16.mxu0 %v583
    %647 = vmatpush1.bf16.msra.mxu0 %v582
    %648 = vmatprep.mubr.bf16.mxu0 %v329
    %649 = vmatmul.mubr.bf16.gmra.mrb[0].mxu0 %v328
    %v650 = vpop.f32.mrb[0].mxu0
    %v651 = vadd.f32 0.0, %v650
    %v652 = vpop.f32.mrb[0].mxu0
    %v653 = vadd.f32 0.0, %v652
    %v654 = vpop.f32.mrb[0].mxu0
    %v655 = vadd.f32 0.0, %v654
    %v656 = vpop.f32.mrb[0].mxu0
    %v657 = vadd.f32 0.0, %v656
    %658 = vmatprep.mubr.bf16.mxu0 %v331
    %659 = vmatmul.mubr.bf16.gmra.mrb[0].mxu0 %v330
    %v660 = vpop.f32.mrb[0].mxu0
    %v661 = vadd.f32 0.0, %v660
    %v662 = vpop.f32.mrb[0].mxu0
    %v663 = vadd.f32 0.0, %v662
    %v664 = vpop.f32.mrb[0].mxu0
    %v665 = vadd.f32 0.0, %v664
    %v666 = vpop.f32.mrb[0].mxu0
    %v667 = vadd.f32 0.0, %v666
    %668 = vmatprep.mubr.bf16.mxu0 %v333
    %669 = vmatmul.mubr.bf16.gmra.mrb[0].mxu0 %v332
    %v670 = vpop.f32.mrb[0].mxu0
    %v671 = vadd.f32 0.0, %v670
    %v672 = vpop.f32.mrb[0].mxu0
    %v673 = vadd.f32 0.0, %v672
    %v674 = vpop.f32.mrb[0].mxu0
    %v675 = vadd.f32 0.0, %v674
    %v676 = vpop.f32.mrb[0].mxu0
    %v677 = vadd.f32 0.0, %v676
    %678 = vmatprep.mubr.bf16.mxu0 %v335
    %679 = vmatmul.mubr.bf16.gmra.mrb[0].mxu0 %v334
    %v680 = vpop.f32.mrb[0].mxu0
    %v681 = vadd.f32 0.0, %v680
    %v682 = vpop.f32.mrb[0].mxu0
    %v683 = vadd.f32 0.0, %v682
    %v684 = vpop.f32.mrb[0].mxu0
    %v685 = vadd.f32 0.0, %v684
    %v686 = vpop.f32.mrb[0].mxu0
    %v687 = vadd.f32 0.0, %v686
    %688 = vmatprep.mubr.bf16.mxu0 %v337
    %689 = vmatmul.mubr.bf16.gmra.mrb[0].mxu0 %v336
    %v690 = vpop.f32.mrb[0].mxu0
    %v691 = vadd.f32 0.0, %v690
    %v692 = vpop.f32.mrb[0].mxu0
    %v693 = vadd.f32 0.0, %v692
    %v694 = vpop.f32.mrb[0].mxu0
    %v695 = vadd.f32 0.0, %v694
    %v696 = vpop.f32.mrb[0].mxu0
    %v697 = vadd.f32 0.0, %v696
    %698 = vmatprep.mubr.bf16.mxu0 %v339
    %699 = vmatmul.mubr.bf16.gmra.mrb[0].mxu0 %v338
    %v700 = vpop.f32.mrb[0].mxu0
    %v701 = vadd.f32 0.0, %v700
    %v702 = vpop.f32.mrb[0].mxu0
    %v703 = vadd.f32 0.0, %v702
    %v704 = vpop.f32.mrb[0].mxu0
    %v705 = vadd.f32 0.0, %v704
    %v706 = vpop.f32.mrb[0].mxu0
    %v707 = vadd.f32 0.0, %v706
    %708 = vmatprep.mubr.bf16.mxu0 %v341
    %709 = vmatmul.mubr.bf16.gmra.mrb[0].mxu0 %v340
    %v710 = vpop.f32.mrb[0].mxu0
    %v711 = vadd.f32 0.0, %v710
    %v712 = vpop.f32.mrb[0].mxu0
    %v713 = vadd.f32 0.0, %v712
    %v714 = vpop.f32.mrb[0].mxu0
    %v715 = vadd.f32 0.0, %v714
    %v716 = vpop.f32.mrb[0].mxu0
    %v717 = vadd.f32 0.0, %v716
    %718 = vmatprep.mubr.bf16.mxu0 %v343
    %719 = vmatmul.mubr.bf16.gmra.mrb[0].mxu0 %v342
    %v720 = vpop.f32.mrb[0].mxu0
    %v721 = vadd.f32 0.0, %v720
    %v722 = vpop.f32.mrb[0].mxu0
    %v723 = vadd.f32 0.0, %v722
    %v724 = vpop.f32.mrb[0].mxu0
    %v725 = vadd.f32 0.0, %v724
    %v726 = vpop.f32.mrb[0].mxu0
    %v727 = vadd.f32 0.0, %v726
    %728 = vmatprep.mubr.bf16.mxu0 %v345
    %729 = vmatmul.mubr.bf16.gmra.mrb[0].mxu0 %v344
    %v730 = vpop.f32.mrb[0].mxu0
    %v731 = vadd.f32 0.0, %v730
    %v732 = vpop.f32.mrb[0].mxu0
    %v733 = vadd.f32 0.0, %v732
    %v734 = vpop.f32.mrb[0].mxu0
    %v735 = vadd.f32 0.0, %v734
    %v736 = vpop.f32.mrb[0].mxu0
    %v737 = vadd.f32 0.0, %v736
    %738 = vmatprep.mubr.bf16.mxu0 %v347
    %739 = vmatmul.mubr.bf16.gmra.mrb[0].mxu0 %v346
    %v740 = vpop.f32.mrb[0].mxu0
    %v741 = vadd.f32 0.0, %v740
    %v742 = vpop.f32.mrb[0].mxu0
    %v743 = vadd.f32 0.0, %v742
    %v744 = vpop.f32.mrb[0].mxu0
    %v745 = vadd.f32 0.0, %v744
    %v746 = vpop.f32.mrb[0].mxu0
    %v747 = vadd.f32 0.0, %v746
    %748 = vmatprep.mubr.bf16.mxu0 %v349
    %749 = vmatmul.mubr.bf16.gmra.mrb[0].mxu0 %v348
    %v750 = vpop.f32.mrb[0].mxu0
    %v751 = vadd.f32 0.0, %v750
    %v752 = vpop.f32.mrb[0].mxu0
    %v753 = vadd.f32 0.0, %v752
    %v754 = vpop.f32.mrb[0].mxu0
    %v755 = vadd.f32 0.0, %v754
    %v756 = vpop.f32.mrb[0].mxu0
    %v757 = vadd.f32 0.0, %v756
    %758 = vmatprep.mubr.bf16.mxu0 %v351
    %759 = vmatmul.mubr.bf16.gmra.mrb[0].mxu0 %v350
    %v760 = vpop.f32.mrb[0].mxu0
    %v761 = vadd.f32 0.0, %v760
    %v762 = vpop.f32.mrb[0].mxu0
    %v763 = vadd.f32 0.0, %v762
    %v764 = vpop.f32.mrb[0].mxu0
    %v765 = vadd.f32 0.0, %v764
    %v766 = vpop.f32.mrb[0].mxu0
    %v767 = vadd.f32 0.0, %v766
    %768 = vmatprep.mubr.bf16.mxu0 %v353
    %769 = vmatmul.mubr.bf16.gmra.mrb[0].mxu0 %v352
    %v770 = vpop.f32.mrb[0].mxu0
    %v771 = vadd.f32 0.0, %v770
    %v772 = vpop.f32.mrb[0].mxu0
    %v773 = vadd.f32 0.0, %v772
    %v774 = vpop.f32.mrb[0].mxu0
    %v775 = vadd.f32 0.0, %v774
    %v776 = vpop.f32.mrb[0].mxu0
    %v777 = vadd.f32 0.0, %v776
    %778 = vmatprep.mubr.bf16.mxu0 %v355
    %779 = vmatmul.mubr.bf16.gmra.mrb[0].mxu0 %v354
    %v780 = vpop.f32.mrb[0].mxu0
    %v781 = vadd.f32 0.0, %v780
    %v782 = vpop.f32.mrb[0].mxu0
    %v783 = vadd.f32 0.0, %v782
    %v784 = vpop.f32.mrb[0].mxu0
    %v785 = vadd.f32 0.0, %v784
    %v786 = vpop.f32.mrb[0].mxu0
    %v787 = vadd.f32 0.0, %v786
    %788 = vmatprep.mubr.bf16.mxu0 %v357
    %789 = vmatmul.mubr.bf16.gmra.mrb[0].mxu0 %v356
    %v790 = vpop.f32.mrb[0].mxu0
    %v791 = vadd.f32 0.0, %v790
    %v792 = vpop.f32.mrb[0].mxu0
    %v793 = vadd.f32 0.0, %v792
    %v794 = vpop.f32.mrb[0].mxu0
    %v795 = vadd.f32 0.0, %v794
    %v796 = vpop.f32.mrb[0].mxu0
    %v797 = vadd.f32 0.0, %v796
    %798 = vmatprep.mubr.bf16.mxu0 %v359
    %799 = vmatmul.mubr.bf16.gmra.mrb[0].mxu0 %v358
    %v800 = vpop.f32.mrb[0].mxu0
    %v801 = vadd.f32 0.0, %v800
    %v802 = vpop.f32.mrb[0].mxu0
    %v803 = vadd.f32 0.0, %v802
    %v804 = vpop.f32.mrb[0].mxu0
    %v805 = vadd.f32 0.0, %v804
    %v806 = vpop.f32.mrb[0].mxu0
    %v807 = vadd.f32 0.0, %v806
    %808 = vmatprep.mubr.bf16.mxu0 %v361
    %809 = vmatmul.mubr.bf16.gmra.mrb[0].mxu0 %v360
    %v810 = vpop.f32.mrb[0].mxu0
    %v811 = vadd.f32 0.0, %v810
    %v812 = vpop.f32.mrb[0].mxu0
    %v813 = vadd.f32 0.0, %v812
    %v814 = vpop.f32.mrb[0].mxu0
    %v815 = vadd.f32 0.0, %v814
    %v816 = vpop.f32.mrb[0].mxu0
    %v817 = vadd.f32 0.0, %v816
    %818 = vmatprep.mubr.bf16.mxu0 %v363
    %819 = vmatmul.mubr.bf16.gmra.mrb[0].mxu0 %v362
    %v820 = vpop.f32.mrb[0].mxu0
    %v821 = vadd.f32 0.0, %v820
    %v822 = vpop.f32.mrb[0].mxu0
    %v823 = vadd.f32 0.0, %v822
    %v824 = vpop.f32.mrb[0].mxu0
    %v825 = vadd.f32 0.0, %v824
    %v826 = vpop.f32.mrb[0].mxu0
    %v827 = vadd.f32 0.0, %v826
    %828 = vmatprep.mubr.bf16.mxu0 %v365
    %829 = vmatmul.mubr.bf16.gmra.mrb[0].mxu0 %v364
    %v830 = vpop.f32.mrb[0].mxu0
    %v831 = vadd.f32 0.0, %v830
    %v832 = vpop.f32.mrb[0].mxu0
    %v833 = vadd.f32 0.0, %v832
    %v834 = vpop.f32.mrb[0].mxu0
    %v835 = vadd.f32 0.0, %v834
    %v836 = vpop.f32.mrb[0].mxu0
    %v837 = vadd.f32 0.0, %v836
    %838 = vmatprep.mubr.bf16.mxu0 %v367
    %839 = vmatmul.mubr.bf16.gmra.mrb[0].mxu0 %v366
    %v840 = vpop.f32.mrb[0].mxu0
    %v841 = vadd.f32 0.0, %v840
    %v842 = vpop.f32.mrb[0].mxu0
    %v843 = vadd.f32 0.0, %v842
    %v844 = vpop.f32.mrb[0].mxu0
    %v845 = vadd.f32 0.0, %v844
    %v846 = vpop.f32.mrb[0].mxu0
    %v847 = vadd.f32 0.0, %v846
    %848 = vmatprep.mubr.bf16.mxu0 %v369
    %849 = vmatmul.mubr.bf16.gmra.mrb[0].mxu0 %v368
    %v850 = vpop.f32.mrb[0].mxu0
    %v851 = vadd.f32 0.0, %v850
    %v852 = vpop.f32.mrb[0].mxu0
    %v853 = vadd.f32 0.0, %v852
    %v854 = vpop.f32.mrb[0].mxu0
    %v855 = vadd.f32 0.0, %v854
    %v856 = vpop.f32.mrb[0].mxu0
    %v857 = vadd.f32 0.0, %v856
    %858 = vmatprep.mubr.bf16.mxu0 %v371
    %859 = vmatmul.mubr.bf16.gmra.mrb[0].mxu0 %v370
    %v860 = vpop.f32.mrb[0].mxu0
    %v861 = vadd.f32 0.0, %v860
    %v862 = vpop.f32.mrb[0].mxu0
    %v863 = vadd.f32 0.0, %v862
    %v864 = vpop.f32.mrb[0].mxu0
    %v865 = vadd.f32 0.0, %v864
    %v866 = vpop.f32.mrb[0].mxu0
    %v867 = vadd.f32 0.0, %v866
    %868 = vmatprep.mubr.bf16.mxu0 %v373
    %869 = vmatmul.mubr.bf16.gmra.mrb[0].mxu0 %v372
    %v870 = vpop.f32.mrb[0].mxu0
    %v871 = vadd.f32 0.0, %v870
    %v872 = vpop.f32.mrb[0].mxu0
    %v873 = vadd.f32 0.0, %v872
    %v874 = vpop.f32.mrb[0].mxu0
    %v875 = vadd.f32 0.0, %v874
    %v876 = vpop.f32.mrb[0].mxu0
    %v877 = vadd.f32 0.0, %v876
    %878 = vmatprep.mubr.bf16.mxu0 %v375
    %879 = vmatmul.mubr.bf16.gmra.mrb[0].mxu0 %v374
    %v880 = vpop.f32.mrb[0].mxu0
    %v881 = vadd.f32 0.0, %v880
    %v882 = vpop.f32.mrb[0].mxu0
    %v883 = vadd.f32 0.0, %v882
    %v884 = vpop.f32.mrb[0].mxu0
    %v885 = vadd.f32 0.0, %v884
    %v886 = vpop.f32.mrb[0].mxu0
    %v887 = vadd.f32 0.0, %v886
    %888 = vmatprep.mubr.bf16.mxu0 %v377
    %889 = vmatmul.mubr.bf16.gmra.mrb[0].mxu0 %v376
    %v890 = vpop.f32.mrb[0].mxu0
    %v891 = vadd.f32 0.0, %v890
    %v892 = vpop.f32.mrb[0].mxu0
    %v893 = vadd.f32 0.0, %v892
    %v894 = vpop.f32.mrb[0].mxu0
    %v895 = vadd.f32 0.0, %v894
    %v896 = vpop.f32.mrb[0].mxu0
    %v897 = vadd.f32 0.0, %v896
    %898 = vmatprep.mubr.bf16.mxu0 %v379
    %899 = vmatmul.mubr.bf16.gmra.mrb[0].mxu0 %v378
    %v900 = vpop.f32.mrb[0].mxu0
    %v901 = vadd.f32 0.0, %v900
    %v902 = vpop.f32.mrb[0].mxu0
    %v903 = vadd.f32 0.0, %v902
    %v904 = vpop.f32.mrb[0].mxu0
    %v905 = vadd.f32 0.0, %v904
    %v906 = vpop.f32.mrb[0].mxu0
    %v907 = vadd.f32 0.0, %v906
    %908 = vmatprep.mubr.bf16.mxu0 %v381
    %909 = vmatmul.mubr.bf16.gmra.mrb[0].mxu0 %v380
    %v910 = vpop.f32.mrb[0].mxu0
    %v911 = vadd.f32 0.0, %v910
    %v912 = vpop.f32.mrb[0].mxu0
    %v913 = vadd.f32 0.0, %v912
    %v914 = vpop.f32.mrb[0].mxu0
    %v915 = vadd.f32 0.0, %v914
    %v916 = vpop.f32.mrb[0].mxu0
    %v917 = vadd.f32 0.0, %v916
    %918 = vmatprep.mubr.bf16.mxu0 %v383
    %919 = vmatmul.mubr.bf16.gmra.mrb[0].mxu0 %v382
    %v920 = vpop.f32.mrb[0].mxu0
    %v921 = vadd.f32 0.0, %v920
    %v922 = vpop.f32.mrb[0].mxu0
    %v923 = vadd.f32 0.0, %v922
    %v924 = vpop.f32.mrb[0].mxu0
    %v925 = vadd.f32 0.0, %v924
    %v926 = vpop.f32.mrb[0].mxu0
    %v927 = vadd.f32 0.0, %v926
    %928 = vmatprep.mubr.bf16.mxu0 %v385
    %929 = vmatmul.mubr.bf16.gmra.mrb[0].mxu0 %v384
    %v930 = vpop.f32.mrb[0].mxu0
    %v931 = vadd.f32 0.0, %v930
    %v932 = vpop.f32.mrb[0].mxu0
    %v933 = vadd.f32 0.0, %v932
    %v934 = vpop.f32.mrb[0].mxu0
    %v935 = vadd.f32 0.0, %v934
    %v936 = vpop.f32.mrb[0].mxu0
    %v937 = vadd.f32 0.0, %v936
    %938 = vmatprep.mubr.bf16.mxu0 %v387
    %939 = vmatmul.mubr.bf16.gmra.mrb[0].mxu0 %v386
    %v940 = vpop.f32.mrb[0].mxu0
    %v941 = vadd.f32 0.0, %v940
    %v942 = vpop.f32.mrb[0].mxu0
    %v943 = vadd.f32 0.0, %v942
    %v944 = vpop.f32.mrb[0].mxu0
    %v945 = vadd.f32 0.0, %v944
    %v946 = vpop.f32.mrb[0].mxu0
    %v947 = vadd.f32 0.0, %v946
    %948 = vmatprep.mubr.bf16.mxu0 %v389
    %949 = vmatmul.mubr.bf16.gmra.mrb[0].mxu0 %v388
    %v950 = vpop.f32.mrb[0].mxu0
    %v951 = vadd.f32 0.0, %v950
    %v952 = vpop.f32.mrb[0].mxu0
    %v953 = vadd.f32 0.0, %v952
    %v954 = vpop.f32.mrb[0].mxu0
    %v955 = vadd.f32 0.0, %v954
    %v956 = vpop.f32.mrb[0].mxu0
    %v957 = vadd.f32 0.0, %v956
    %958 = vmatprep.mubr.bf16.mxu0 %v391
    %959 = vmatmul.mubr.bf16.gmra.mrb[0].mxu0 %v390
    %v960 = vpop.f32.mrb[0].mxu0
    %v961 = vadd.f32 0.0, %v960
    %v962 = vpop.f32.mrb[0].mxu0
    %v963 = vadd.f32 0.0, %v962
    %v964 = vpop.f32.mrb[0].mxu0
    %v965 = vadd.f32 0.0, %v964
    %v966 = vpop.f32.mrb[0].mxu0
    %v967 = vadd.f32 0.0, %v966
    %968 = vdwg.mxu0
    %v969 = vadd.f32 %v651, %v655
    %v970 = vadd.f32 %v969, %v661
    %v971 = vadd.f32 %v970, %v665
    %v972 = vadd.f32 %v971, %v671
    %v973 = vadd.f32 %v972, %v675
    %v974 = vadd.f32 %v973, %v681
    %v975 = vadd.f32 %v974, %v685
    %v976 = vadd.f32 %v975, %v691
    %v977 = vadd.f32 %v976, %v695
    %v978 = vadd.f32 %v977, %v701
    %v979 = vadd.f32 %v978, %v705
    %v980 = vadd.f32 %v979, %v711
    %v981 = vadd.f32 %v980, %v715
    %v982 = vadd.f32 %v981, %v721
    %v983 = vadd.f32 %v982, %v725
    %v984 = vadd.f32 %v983, %v731
    %v985 = vadd.f32 %v984, %v735
    %v986 = vadd.f32 %v985, %v741
    %v987 = vadd.f32 %v986, %v745
    %v988 = vadd.f32 %v987, %v751
    %v989 = vadd.f32 %v988, %v755
    %v990 = vadd.f32 %v989, %v761
    %v991 = vadd.f32 %v990, %v765
    %v992 = vadd.f32 %v991, %v771
    %v993 = vadd.f32 %v992, %v775
    %v994 = vadd.f32 %v993, %v781
    %v995 = vadd.f32 %v994, %v785
    %v996 = vadd.f32 %v995, %v791
    %v997 = vadd.f32 %v996, %v795
    %v998 = vadd.f32 %v997, %v801
    %v999 = vadd.f32 %v998, %v805
    %v1000 = vadd.f32 %v999, %v811
    %v1001 = vadd.f32 %v1000, %v815
    %v1002 = vadd.f32 %v1001, %v821
    %v1003 = vadd.f32 %v1002, %v825
    %v1004 = vadd.f32 %v1003, %v831
    %v1005 = vadd.f32 %v1004, %v835
    %v1006 = vadd.f32 %v1005, %v841
    %v1007 = vadd.f32 %v1006, %v845
    %v1008 = vadd.f32 %v1007, %v851
    %v1009 = vadd.f32 %v1008, %v855
    %v1010 = vadd.f32 %v1009, %v861
    %v1011 = vadd.f32 %v1010, %v865
    %v1012 = vadd.f32 %v1011, %v871
    %v1013 = vadd.f32 %v1012, %v875
    %v1014 = vadd.f32 %v1013, %v881
    %v1015 = vadd.f32 %v1014, %v885
    %v1016 = vadd.f32 %v1015, %v891
    %v1017 = vadd.f32 %v1016, %v895
    %v1018 = vadd.f32 %v1017, %v901
    %v1019 = vadd.f32 %v1018, %v905
    %v1020 = vadd.f32 %v1019, %v911
    %v1021 = vadd.f32 %v1020, %v915
    %v1022 = vadd.f32 %v1021, %v921
    %v1023 = vadd.f32 %v1022, %v925
    %v1024 = vadd.f32 %v1023, %v931
    %v1025 = vadd.f32 %v1024, %v935
    %v1026 = vadd.f32 %v1025, %v941
    %v1027 = vadd.f32 %v1026, %v945
    %v1028 = vadd.f32 %v1027, %v951
    %v1029 = vadd.f32 %v1028, %v955
    %v1030 = vadd.f32 %v1029, %v961
    %v1031 = vadd.f32 %v1030, %v965
    %v1032 = vrot.slane %v1031, 4
    %v1033 = vadd.f32 %v1031, %v1032
    %v1034 = vrot.slane %v1033, 2
    %v1035 = vadd.f32 %v1033, %v1034
    %v1036 = vrot.slane %v1035, 1
    %v1037 = vadd.f32 %v1035, %v1036
    %v1038 = vadd.f32 %v653, %v657
    %v1039 = vadd.f32 %v1038, %v663
    %v1040 = vadd.f32 %v1039, %v667
    %v1041 = vadd.f32 %v1040, %v673
    %v1042 = vadd.f32 %v1041, %v677
    %v1043 = vadd.f32 %v1042, %v683
    %v1044 = vadd.f32 %v1043, %v687
    %v1045 = vadd.f32 %v1044, %v693
    %v1046 = vadd.f32 %v1045, %v697
    %v1047 = vadd.f32 %v1046, %v703
    %v1048 = vadd.f32 %v1047, %v707
    %v1049 = vadd.f32 %v1048, %v713
    %v1050 = vadd.f32 %v1049, %v717
    %v1051 = vadd.f32 %v1050, %v723
    %v1052 = vadd.f32 %v1051, %v727
    %v1053 = vadd.f32 %v1052, %v733
    %v1054 = vadd.f32 %v1053, %v737
    %v1055 = vadd.f32 %v1054, %v743
    %v1056 = vadd.f32 %v1055, %v747
    %v1057 = vadd.f32 %v1056, %v753
    %v1058 = vadd.f32 %v1057, %v757
    %v1059 = vadd.f32 %v1058, %v763
    %v1060 = vadd.f32 %v1059, %v767
    %v1061 = vadd.f32 %v1060, %v773
    %v1062 = vadd.f32 %v1061, %v777
    %v1063 = vadd.f32 %v1062, %v783
    %v1064 = vadd.f32 %v1063, %v787
    %v1065 = vadd.f32 %v1064, %v793
    %v1066 = vadd.f32 %v1065, %v797
    %v1067 = vadd.f32 %v1066, %v803
    %v1068 = vadd.f32 %v1067, %v807
    %v1069 = vadd.f32 %v1068, %v813
    %v1070 = vadd.f32 %v1069, %v817
    %v1071 = vadd.f32 %v1070, %v823
    %v1072 = vadd.f32 %v1071, %v827
    %v1073 = vadd.f32 %v1072, %v833
    %v1074 = vadd.f32 %v1073, %v837
    %v1075 = vadd.f32 %v1074, %v843
    %v1076 = vadd.f32 %v1075, %v847
    %v1077 = vadd.f32 %v1076, %v853
    %v1078 = vadd.f32 %v1077, %v857
    %v1079 = vadd.f32 %v1078, %v863
    %v1080 = vadd.f32 %v1079, %v867
    %v1081 = vadd.f32 %v1080, %v873
    %v1082 = vadd.f32 %v1081, %v877
    %v1083 = vadd.f32 %v1082, %v883
    %v1084 = vadd.f32 %v1083, %v887
    %v1085 = vadd.f32 %v1084, %v893
    %v1086 = vadd.f32 %v1085, %v897
    %v1087 = vadd.f32 %v1086, %v903
    %v1088 = vadd.f32 %v1087, %v907
    %v1089 = vadd.f32 %v1088, %v913
    %v1090 = vadd.f32 %v1089, %v917
    %v1091 = vadd.f32 %v1090, %v923
    %v1092 = vadd.f32 %v1091, %v927
    %v1093 = vadd.f32 %v1092, %v933
    %v1094 = vadd.f32 %v1093, %v937
    %v1095 = vadd.f32 %v1094, %v943
    %v1096 = vadd.f32 %v1095, %v947
    %v1097 = vadd.f32 %v1096, %v953
    %v1098 = vadd.f32 %v1097, %v957
    %v1099 = vadd.f32 %v1098, %v963
    %v1100 = vadd.f32 %v1099, %v967
    %v1101 = vrot.slane %v1100, 4
    %v1102 = vadd.f32 %v1100, %v1101
    %v1103 = vrot.slane %v1102, 2
    %v1104 = vadd.f32 %v1102, %v1103
    %v1105 = vrot.slane %v1104, 1
    %v1106 = vadd.f32 %v1104, %v1105
    %v1107 = vrcp.pop 512.0
    %v1108 = vmul.f32 %v1037, %v1107
    %v1109 = vmul.f32 %v1106, %v1107
    %v1110 = vsub.f32 %v651, %v1108
    %v1111 = vsub.f32 %v653, %v1109
    %v1112 = vsub.f32 %v655, %v1108
    %v1113 = vsub.f32 %v657, %v1109
    %v1114 = vsub.f32 %v661, %v1108
    %v1115 = vsub.f32 %v663, %v1109
    %v1116 = vsub.f32 %v665, %v1108
    %v1117 = vsub.f32 %v667, %v1109
    %v1118 = vsub.f32 %v671, %v1108
    %v1119 = vsub.f32 %v673, %v1109
    %v1120 = vsub.f32 %v675, %v1108
    %v1121 = vsub.f32 %v677, %v1109
    %v1122 = vsub.f32 %v681, %v1108
    %v1123 = vsub.f32 %v683, %v1109
    %v1124 = vsub.f32 %v685, %v1108
    %v1125 = vsub.f32 %v687, %v1109
    %v1126 = vsub.f32 %v691, %v1108
    %v1127 = vsub.f32 %v693, %v1109
    %v1128 = vsub.f32 %v695, %v1108
    %v1129 = vsub.f32 %v697, %v1109
    %v1130 = vsub.f32 %v701, %v1108
    %v1131 = vsub.f32 %v703, %v1109
    %v1132 = vsub.f32 %v705, %v1108
    %v1133 = vsub.f32 %v707, %v1109
    %v1134 = vsub.f32 %v711, %v1108
    %v1135 = vsub.f32 %v713, %v1109
    %v1136 = vsub.f32 %v715, %v1108
    %v1137 = vsub.f32 %v717, %v1109
    %v1138 = vsub.f32 %v721, %v1108
    %v1139 = vsub.f32 %v723, %v1109
    %v1140 = vsub.f32 %v725, %v1108
    %v1141 = vsub.f32 %v727, %v1109
    %v1142 = vsub.f32 %v731, %v1108
    %v1143 = vsub.f32 %v733, %v1109
    %v1144 = vsub.f32 %v735, %v1108
    %v1145 = vsub.f32 %v737, %v1109
    %v1146 = vsub.f32 %v741, %v1108
    %v1147 = vsub.f32 %v743, %v1109
    %v1148 = vsub.f32 %v745, %v1108
    %v1149 = vsub.f32 %v747, %v1109
    %v1150 = vsub.f32 %v751, %v1108
    %v1151 = vsub.f32 %v753, %v1109
    %v1152 = vsub.f32 %v755, %v1108
    %v1153 = vsub.f32 %v757, %v1109
    %v1154 = vsub.f32 %v761, %v1108
    %v1155 = vsub.f32 %v763, %v1109
    %v1156 = vsub.f32 %v765, %v1108
    %v1157 = vsub.f32 %v767, %v1109
    %v1158 = vsub.f32 %v771, %v1108
    %v1159 = vsub.f32 %v773, %v1109
    %v1160 = vsub.f32 %v775, %v1108
    %v1161 = vsub.f32 %v777, %v1109
    %v1162 = vsub.f32 %v781, %v1108
    %v1163 = vsub.f32 %v783, %v1109
    %v1164 = vsub.f32 %v785, %v1108
    %v1165 = vsub.f32 %v787, %v1109
    %v1166 = vsub.f32 %v791, %v1108
    %v1167 = vsub.f32 %v793, %v1109
    %v1168 = vsub.f32 %v795, %v1108
    %v1169 = vsub.f32 %v797, %v1109
    %v1170 = vsub.f32 %v801, %v1108
    %v1171 = vsub.f32 %v803, %v1109
    %v1172 = vsub.f32 %v805, %v1108
    %v1173 = vsub.f32 %v807, %v1109
    %v1174 = vsub.f32 %v811, %v1108
    %v1175 = vsub.f32 %v813, %v1109
    %v1176 = vsub.f32 %v815, %v1108
    %v1177 = vsub.f32 %v817, %v1109
    %v1178 = vsub.f32 %v821, %v1108
    %v1179 = vsub.f32 %v823, %v1109
    %v1180 = vsub.f32 %v825, %v1108
    %v1181 = vsub.f32 %v827, %v1109
    %v1182 = vsub.f32 %v831, %v1108
    %v1183 = vsub.f32 %v833, %v1109
    %v1184 = vsub.f32 %v835, %v1108
    %v1185 = vsub.f32 %v837, %v1109
    %v1186 = vsub.f32 %v841, %v1108
    %v1187 = vsub.f32 %v843, %v1109
    %v1188 = vsub.f32 %v845, %v1108
    %v1189 = vsub.f32 %v847, %v1109
    %v1190 = vsub.f32 %v851, %v1108
    %v1191 = vsub.f32 %v853, %v1109
    %v1192 = vsub.f32 %v855, %v1108
    %v1193 = vsub.f32 %v857, %v1109
    %v1194 = vsub.f32 %v861, %v1108
    %v1195 = vsub.f32 %v863, %v1109
    %v1196 = vsub.f32 %v865, %v1108
    %v1197 = vsub.f32 %v867, %v1109
    %v1198 = vsub.f32 %v871, %v1108
    %v1199 = vsub.f32 %v873, %v1109
    %v1200 = vsub.f32 %v875, %v1108
    %v1201 = vsub.f32 %v877, %v1109
    %v1202 = vsub.f32 %v881, %v1108
    %v1203 = vsub.f32 %v883, %v1109
    %v1204 = vsub.f32 %v885, %v1108
    %v1205 = vsub.f32 %v887, %v1109
    %v1206 = vsub.f32 %v891, %v1108
    %v1207 = vsub.f32 %v893, %v1109
    %v1208 = vsub.f32 %v895, %v1108
    %v1209 = vsub.f32 %v897, %v1109
    %v1210 = vsub.f32 %v901, %v1108
    %v1211 = vsub.f32 %v903, %v1109
    %v1212 = vsub.f32 %v905, %v1108
    %v1213 = vsub.f32 %v907, %v1109
    %v1214 = vsub.f32 %v911, %v1108
    %v1215 = vsub.f32 %v913, %v1109
    %v1216 = vsub.f32 %v915, %v1108
    %v1217 = vsub.f32 %v917, %v1109
    %v1218 = vsub.f32 %v921, %v1108
    %v1219 = vsub.f32 %v923, %v1109
    %v1220 = vsub.f32 %v925, %v1108
    %v1221 = vsub.f32 %v927, %v1109
    %v1222 = vsub.f32 %v931, %v1108
    %v1223 = vsub.f32 %v933, %v1109
    %v1224 = vsub.f32 %v935, %v1108
    %v1225 = vsub.f32 %v937, %v1109
    %v1226 = vsub.f32 %v941, %v1108
    %v1227 = vsub.f32 %v943, %v1109
    %v1228 = vsub.f32 %v945, %v1108
    %v1229 = vsub.f32 %v947, %v1109
    %v1230 = vsub.f32 %v951, %v1108
    %v1231 = vsub.f32 %v953, %v1109
    %v1232 = vsub.f32 %v955, %v1108
    %v1233 = vsub.f32 %v957, %v1109
    %v1234 = vsub.f32 %v961, %v1108
    %v1235 = vsub.f32 %v963, %v1109
    %v1236 = vsub.f32 %v965, %v1108
    %v1237 = vsub.f32 %v967, %v1109
    %v1238 = vmul.f32 %v1110, %v1110
    %v1239 = vmul.f32 %v1111, %v1111
    %v1240 = vmul.f32 %v1112, %v1112
    %v1241 = vmul.f32 %v1113, %v1113
    %v1242 = vmul.f32 %v1114, %v1114
    %v1243 = vmul.f32 %v1115, %v1115
    %v1244 = vmul.f32 %v1116, %v1116
    %v1245 = vmul.f32 %v1117, %v1117
    %v1246 = vmul.f32 %v1118, %v1118
    %v1247 = vmul.f32 %v1119, %v1119
    %v1248 = vmul.f32 %v1120, %v1120
    %v1249 = vmul.f32 %v1121, %v1121
    %v1250 = vmul.f32 %v1122, %v1122
    %v1251 = vmul.f32 %v1123, %v1123
    %v1252 = vmul.f32 %v1124, %v1124
    %v1253 = vmul.f32 %v1125, %v1125
    %v1254 = vmul.f32 %v1126, %v1126
    %v1255 = vmul.f32 %v1127, %v1127
    %v1256 = vmul.f32 %v1128, %v1128
    %v1257 = vmul.f32 %v1129, %v1129
    %v1258 = vmul.f32 %v1130, %v1130
    %v1259 = vmul.f32 %v1131, %v1131
    %v1260 = vmul.f32 %v1132, %v1132
    %v1261 = vmul.f32 %v1133, %v1133
    %v1262 = vmul.f32 %v1134, %v1134
    %v1263 = vmul.f32 %v1135, %v1135
    %v1264 = vmul.f32 %v1136, %v1136
    %v1265 = vmul.f32 %v1137, %v1137
    %v1266 = vmul.f32 %v1138, %v1138
    %v1267 = vmul.f32 %v1139, %v1139
    %v1268 = vmul.f32 %v1140, %v1140
    %v1269 = vmul.f32 %v1141, %v1141
    %v1270 = vmul.f32 %v1142, %v1142
    %v1271 = vmul.f32 %v1143, %v1143
    %v1272 = vmul.f32 %v1144, %v1144
    %v1273 = vmul.f32 %v1145, %v1145
    %v1274 = vmul.f32 %v1146, %v1146
    %v1275 = vmul.f32 %v1147, %v1147
    %v1276 = vmul.f32 %v1148, %v1148
    %v1277 = vmul.f32 %v1149, %v1149
    %v1278 = vmul.f32 %v1150, %v1150
    %v1279 = vmul.f32 %v1151, %v1151
    %v1280 = vmul.f32 %v1152, %v1152
    %v1281 = vmul.f32 %v1153, %v1153
    %v1282 = vmul.f32 %v1154, %v1154
    %v1283 = vmul.f32 %v1155, %v1155
    %v1284 = vmul.f32 %v1156, %v1156
    %v1285 = vmul.f32 %v1157, %v1157
    %v1286 = vmul.f32 %v1158, %v1158
    %v1287 = vmul.f32 %v1159, %v1159
    %v1288 = vmul.f32 %v1160, %v1160
    %v1289 = vmul.f32 %v1161, %v1161
    %v1290 = vmul.f32 %v1162, %v1162
    %v1291 = vmul.f32 %v1163, %v1163
    %v1292 = vmul.f32 %v1164, %v1164
    %v1293 = vmul.f32 %v1165, %v1165
    %v1294 = vmul.f32 %v1166, %v1166
    %v1295 = vmul.f32 %v1167, %v1167
    %v1296 = vmul.f32 %v1168, %v1168
    %v1297 = vmul.f32 %v1169, %v1169
    %v1298 = vmul.f32 %v1170, %v1170
    %v1299 = vmul.f32 %v1171, %v1171
    %v1300 = vmul.f32 %v1172, %v1172
    %v1301 = vmul.f32 %v1173, %v1173
    %v1302 = vmul.f32 %v1174, %v1174
    %v1303 = vmul.f32 %v1175, %v1175
    %v1304 = vmul.f32 %v1176, %v1176
    %v1305 = vmul.f32 %v1177, %v1177
    %v1306 = vmul.f32 %v1178, %v1178
    %v1307 = vmul.f32 %v1179, %v1179
    %v1308 = vmul.f32 %v1180, %v1180
    %v1309 = vmul.f32 %v1181, %v1181
    %v1310 = vmul.f32 %v1182, %v1182
    %v1311 = vmul.f32 %v1183, %v1183
    %v1312 = vmul.f32 %v1184, %v1184
    %v1313 = vmul.f32 %v1185, %v1185
    %v1314 = vmul.f32 %v1186, %v1186
    %v1315 = vmul.f32 %v1187, %v1187
    %v1316 = vmul.f32 %v1188, %v1188
    %v1317 = vmul.f32 %v1189, %v1189
    %v1318 = vmul.f32 %v1190, %v1190
    %v1319 = vmul.f32 %v1191, %v1191
    %v1320 = vmul.f32 %v1192, %v1192
    %v1321 = vmul.f32 %v1193, %v1193
    %v1322 = vmul.f32 %v1194, %v1194
    %v1323 = vmul.f32 %v1195, %v1195
    %v1324 = vmul.f32 %v1196, %v1196
    %v1325 = vmul.f32 %v1197, %v1197
    %v1326 = vmul.f32 %v1198, %v1198
    %v1327 = vmul.f32 %v1199, %v1199
    %v1328 = vmul.f32 %v1200, %v1200
    %v1329 = vmul.f32 %v1201, %v1201
    %v1330 = vmul.f32 %v1202, %v1202
    %v1331 = vmul.f32 %v1203, %v1203
    %v1332 = vmul.f32 %v1204, %v1204
    %v1333 = vmul.f32 %v1205, %v1205
    %v1334 = vmul.f32 %v1206, %v1206
    %v1335 = vmul.f32 %v1207, %v1207
    %v1336 = vmul.f32 %v1208, %v1208
    %v1337 = vmul.f32 %v1209, %v1209
    %v1338 = vmul.f32 %v1210, %v1210
    %v1339 = vmul.f32 %v1211, %v1211
    %v1340 = vmul.f32 %v1212, %v1212
    %v1341 = vmul.f32 %v1213, %v1213
    %v1342 = vmul.f32 %v1214, %v1214
    %v1343 = vmul.f32 %v1215, %v1215
    %v1344 = vmul.f32 %v1216, %v1216
    %v1345 = vmul.f32 %v1217, %v1217
    %v1346 = vmul.f32 %v1218, %v1218
    %v1347 = vmul.f32 %v1219, %v1219
    %v1348 = vmul.f32 %v1220, %v1220
    %v1349 = vmul.f32 %v1221, %v1221
    %v1350 = vmul.f32 %v1222, %v1222
    %v1351 = vmul.f32 %v1223, %v1223
    %v1352 = vmul.f32 %v1224, %v1224
    %v1353 = vmul.f32 %v1225, %v1225
    %v1354 = vmul.f32 %v1226, %v1226
    %v1355 = vmul.f32 %v1227, %v1227
    %v1356 = vmul.f32 %v1228, %v1228
    %v1357 = vmul.f32 %v1229, %v1229
    %v1358 = vmul.f32 %v1230, %v1230
    %v1359 = vmul.f32 %v1231, %v1231
    %v1360 = vmul.f32 %v1232, %v1232
    %v1361 = vmul.f32 %v1233, %v1233
    %v1362 = vmul.f32 %v1234, %v1234
    %v1363 = vmul.f32 %v1235, %v1235
    %v1364 = vmul.f32 %v1236, %v1236
    %v1365 = vmul.f32 %v1237, %v1237
    %v1366 = vadd.f32 %v1238, %v1240
    %v1367 = vadd.f32 %v1366, %v1242
    %v1368 = vadd.f32 %v1367, %v1244
    %v1369 = vadd.f32 %v1368, %v1246
    %v1370 = vadd.f32 %v1369, %v1248
    %v1371 = vadd.f32 %v1370, %v1250
    %v1372 = vadd.f32 %v1371, %v1252
    %v1373 = vadd.f32 %v1372, %v1254
    %v1374 = vadd.f32 %v1373, %v1256
    %v1375 = vadd.f32 %v1374, %v1258
    %v1376 = vadd.f32 %v1375, %v1260
    %v1377 = vadd.f32 %v1376, %v1262
    %v1378 = vadd.f32 %v1377, %v1264
    %v1379 = vadd.f32 %v1378, %v1266
    %v1380 = vadd.f32 %v1379, %v1268
    %v1381 = vadd.f32 %v1380, %v1270
    %v1382 = vadd.f32 %v1381, %v1272
    %v1383 = vadd.f32 %v1382, %v1274
    %v1384 = vadd.f32 %v1383, %v1276
    %v1385 = vadd.f32 %v1384, %v1278
    %v1386 = vadd.f32 %v1385, %v1280
    %v1387 = vadd.f32 %v1386, %v1282
    %v1388 = vadd.f32 %v1387, %v1284
    %v1389 = vadd.f32 %v1388, %v1286
    %v1390 = vadd.f32 %v1389, %v1288
    %v1391 = vadd.f32 %v1390, %v1290
    %v1392 = vadd.f32 %v1391, %v1292
    %v1393 = vadd.f32 %v1392, %v1294
    %v1394 = vadd.f32 %v1393, %v1296
    %v1395 = vadd.f32 %v1394, %v1298
    %v1396 = vadd.f32 %v1395, %v1300
    %v1397 = vadd.f32 %v1396, %v1302
    %v1398 = vadd.f32 %v1397, %v1304
    %v1399 = vadd.f32 %v1398, %v1306
    %v1400 = vadd.f32 %v1399, %v1308
    %v1401 = vadd.f32 %v1400, %v1310
    %v1402 = vadd.f32 %v1401, %v1312
    %v1403 = vadd.f32 %v1402, %v1314
    %v1404 = vadd.f32 %v1403, %v1316
    %v1405 = vadd.f32 %v1404, %v1318
    %v1406 = vadd.f32 %v1405, %v1320
    %v1407 = vadd.f32 %v1406, %v1322
    %v1408 = vadd.f32 %v1407, %v1324
    %v1409 = vadd.f32 %v1408, %v1326
    %v1410 = vadd.f32 %v1409, %v1328
    %v1411 = vadd.f32 %v1410, %v1330
    %v1412 = vadd.f32 %v1411, %v1332
    %v1413 = vadd.f32 %v1412, %v1334
    %v1414 = vadd.f32 %v1413, %v1336
    %v1415 = vadd.f32 %v1414, %v1338
    %v1416 = vadd.f32 %v1415, %v1340
    %v1417 = vadd.f32 %v1416, %v1342
    %v1418 = vadd.f32 %v1417, %v1344
    %v1419 = vadd.f32 %v1418, %v1346
    %v1420 = vadd.f32 %v1419, %v1348
    %v1421 = vadd.f32 %v1420, %v1350
    %v1422 = vadd.f32 %v1421, %v1352
    %v1423 = vadd.f32 %v1422, %v1354
    %v1424 = vadd.f32 %v1423, %v1356
    %v1425 = vadd.f32 %v1424, %v1358
    %v1426 = vadd.f32 %v1425, %v1360
    %v1427 = vadd.f32 %v1426, %v1362
    %v1428 = vadd.f32 %v1427, %v1364
    %v1429 = vrot.slane %v1428, 4
    %v1430 = vadd.f32 %v1428, %v1429
    %v1431 = vrot.slane %v1430, 2
    %v1432 = vadd.f32 %v1430, %v1431
    %v1433 = vrot.slane %v1432, 1
    %v1434 = vadd.f32 %v1432, %v1433
    %v1435 = vadd.f32 %v1239, %v1241
    %v1436 = vadd.f32 %v1435, %v1243
    %v1437 = vadd.f32 %v1436, %v1245
    %v1438 = vadd.f32 %v1437, %v1247
    %v1439 = vadd.f32 %v1438, %v1249
    %v1440 = vadd.f32 %v1439, %v1251
    %v1441 = vadd.f32 %v1440, %v1253
    %v1442 = vadd.f32 %v1441, %v1255
    %v1443 = vadd.f32 %v1442, %v1257
    %v1444 = vadd.f32 %v1443, %v1259
    %v1445 = vadd.f32 %v1444, %v1261
    %v1446 = vadd.f32 %v1445, %v1263
    %v1447 = vadd.f32 %v1446, %v1265
    %v1448 = vadd.f32 %v1447, %v1267
    %v1449 = vadd.f32 %v1448, %v1269
    %v1450 = vadd.f32 %v1449, %v1271
    %v1451 = vadd.f32 %v1450, %v1273
    %v1452 = vadd.f32 %v1451, %v1275
    %v1453 = vadd.f32 %v1452, %v1277
    %v1454 = vadd.f32 %v1453, %v1279
    %v1455 = vadd.f32 %v1454, %v1281
    %v1456 = vadd.f32 %v1455, %v1283
    %v1457 = vadd.f32 %v1456, %v1285
    %v1458 = vadd.f32 %v1457, %v1287
    %v1459 = vadd.f32 %v1458, %v1289
    %v1460 = vadd.f32 %v1459, %v1291
    %v1461 = vadd.f32 %v1460, %v1293
    %v1462 = vadd.f32 %v1461, %v1295
    %v1463 = vadd.f32 %v1462, %v1297
    %v1464 = vadd.f32 %v1463, %v1299
    %v1465 = vadd.f32 %v1464, %v1301
    %v1466 = vadd.f32 %v1465, %v1303
    %v1467 = vadd.f32 %v1466, %v1305
    %v1468 = vadd.f32 %v1467, %v1307
    %v1469 = vadd.f32 %v1468, %v1309
    %v1470 = vadd.f32 %v1469, %v1311
    %v1471 = vadd.f32 %v1470, %v1313
    %v1472 = vadd.f32 %v1471, %v1315
    %v1473 = vadd.f32 %v1472, %v1317
    %v1474 = vadd.f32 %v1473, %v1319
    %v1475 = vadd.f32 %v1474, %v1321
    %v1476 = vadd.f32 %v1475, %v1323
    %v1477 = vadd.f32 %v1476, %v1325
    %v1478 = vadd.f32 %v1477, %v1327
    %v1479 = vadd.f32 %v1478, %v1329
    %v1480 = vadd.f32 %v1479, %v1331
    %v1481 = vadd.f32 %v1480, %v1333
    %v1482 = vadd.f32 %v1481, %v1335
    %v1483 = vadd.f32 %v1482, %v1337
    %v1484 = vadd.f32 %v1483, %v1339
    %v1485 = vadd.f32 %v1484, %v1341
    %v1486 = vadd.f32 %v1485, %v1343
    %v1487 = vadd.f32 %v1486, %v1345
    %v1488 = vadd.f32 %v1487, %v1347
    %v1489 = vadd.f32 %v1488, %v1349
    %v1490 = vadd.f32 %v1489, %v1351
    %v1491 = vadd.f32 %v1490, %v1353
    %v1492 = vadd.f32 %v1491, %v1355
    %v1493 = vadd.f32 %v1492, %v1357
    %v1494 = vadd.f32 %v1493, %v1359
    %v1495 = vadd.f32 %v1494, %v1361
    %v1496 = vadd.f32 %v1495, %v1363
    %v1497 = vadd.f32 %v1496, %v1365
    %v1498 = vrot.slane %v1497, 4
    %v1499 = vadd.f32 %v1497, %v1498
    %v1500 = vrot.slane %v1499, 2
    %v1501 = vadd.f32 %v1499, %v1500
    %v1502 = vrot.slane %v1501, 1
    %v1503 = vadd.f32 %v1501, %v1502
    %v1504 = vmul.f32 %v1434, %v1107
    %v1505 = vmul.f32 %v1503, %v1107
    %v1506 = vadd.f32 %v1504, 1e-05
    %v1507 = vadd.f32 %v1505, 1e-05
    %v1508 = vrsqrt.pop %v1506
    %v1509 = vrsqrt.pop %v1507
    %v1510 = vmul.f32 %v1110, %v1508
    %v1511 = vmul.f32 %v1111, %v1509
    %v1512 = vmul.f32 %v1112, %v1508
    %v1513 = vmul.f32 %v1113, %v1509
    %v1514 = vmul.f32 %v1114, %v1508
    %v1515 = vmul.f32 %v1115, %v1509
    %v1516 = vmul.f32 %v1116, %v1508
    %v1517 = vmul.f32 %v1117, %v1509
    %v1518 = vmul.f32 %v1118, %v1508
    %v1519 = vmul.f32 %v1119, %v1509
    %v1520 = vmul.f32 %v1120, %v1508
    %v1521 = vmul.f32 %v1121, %v1509
    %v1522 = vmul.f32 %v1122, %v1508
    %v1523 = vmul.f32 %v1123, %v1509
    %v1524 = vmul.f32 %v1124, %v1508
    %v1525 = vmul.f32 %v1125, %v1509
    %v1526 = vmul.f32 %v1126, %v1508
    %v1527 = vmul.f32 %v1127, %v1509
    %v1528 = vmul.f32 %v1128, %v1508
    %v1529 = vmul.f32 %v1129, %v1509
    %v1530 = vmul.f32 %v1130, %v1508
    %v1531 = vmul.f32 %v1131, %v1509
    %v1532 = vmul.f32 %v1132, %v1508
    %v1533 = vmul.f32 %v1133, %v1509
    %v1534 = vmul.f32 %v1134, %v1508
    %v1535 = vmul.f32 %v1135, %v1509
    %v1536 = vmul.f32 %v1136, %v1508
    %v1537 = vmul.f32 %v1137, %v1509
    %v1538 = vmul.f32 %v1138, %v1508
    %v1539 = vmul.f32 %v1139, %v1509
    %v1540 = vmul.f32 %v1140, %v1508
    %v1541 = vmul.f32 %v1141, %v1509
    %v1542 = vmul.f32 %v1142, %v1508
    %v1543 = vmul.f32 %v1143, %v1509
    %v1544 = vmul.f32 %v1144, %v1508
    %v1545 = vmul.f32 %v1145, %v1509
    %v1546 = vmul.f32 %v1146, %v1508
    %v1547 = vmul.f32 %v1147, %v1509
    %v1548 = vmul.f32 %v1148, %v1508
    %v1549 = vmul.f32 %v1149, %v1509
    %v1550 = vmul.f32 %v1150, %v1508
    %v1551 = vmul.f32 %v1151, %v1509
    %v1552 = vmul.f32 %v1152, %v1508
    %v1553 = vmul.f32 %v1153, %v1509
    %v1554 = vmul.f32 %v1154, %v1508
    %v1555 = vmul.f32 %v1155, %v1509
    %v1556 = vmul.f32 %v1156, %v1508
    %v1557 = vmul.f32 %v1157, %v1509
    %v1558 = vmul.f32 %v1158, %v1508
    %v1559 = vmul.f32 %v1159, %v1509
    %v1560 = vmul.f32 %v1160, %v1508
    %v1561 = vmul.f32 %v1161, %v1509
    %v1562 = vmul.f32 %v1162, %v1508
    %v1563 = vmul.f32 %v1163, %v1509
    %v1564 = vmul.f32 %v1164, %v1508
    %v1565 = vmul.f32 %v1165, %v1509
    %v1566 = vmul.f32 %v1166, %v1508
    %v1567 = vmul.f32 %v1167, %v1509
    %v1568 = vmul.f32 %v1168, %v1508
    %v1569 = vmul.f32 %v1169, %v1509
    %v1570 = vmul.f32 %v1170, %v1508
    %v1571 = vmul.f32 %v1171, %v1509
    %v1572 = vmul.f32 %v1172, %v1508
    %v1573 = vmul.f32 %v1173, %v1509
    %v1574 = vmul.f32 %v1174, %v1508
    %v1575 = vmul.f32 %v1175, %v1509
    %v1576 = vmul.f32 %v1176, %v1508
    %v1577 = vmul.f32 %v1177, %v1509
    %v1578 = vmul.f32 %v1178, %v1508
    %v1579 = vmul.f32 %v1179, %v1509
    %v1580 = vmul.f32 %v1180, %v1508
    %v1581 = vmul.f32 %v1181, %v1509
    %v1582 = vmul.f32 %v1182, %v1508
    %v1583 = vmul.f32 %v1183, %v1509
    %v1584 = vmul.f32 %v1184, %v1508
    %v1585 = vmul.f32 %v1185, %v1509
    %v1586 = vmul.f32 %v1186, %v1508
    %v1587 = vmul.f32 %v1187, %v1509
    %v1588 = vmul.f32 %v1188, %v1508
    %v1589 = vmul.f32 %v1189, %v1509
    %v1590 = vmul.f32 %v1190, %v1508
    %v1591 = vmul.f32 %v1191, %v1509
    %v1592 = vmul.f32 %v1192, %v1508
    %v1593 = vmul.f32 %v1193, %v1509
    %v1594 = vmul.f32 %v1194, %v1508
    %v1595 = vmul.f32 %v1195, %v1509
    %v1596 = vmul.f32 %v1196, %v1508
    %v1597 = vmul.f32 %v1197, %v1509
    %v1598 = vmul.f32 %v1198, %v1508
    %v1599 = vmul.f32 %v1199, %v1509
    %v1600 = vmul.f32 %v1200, %v1508
    %v1601 = vmul.f32 %v1201, %v1509
    %v1602 = vmul.f32 %v1202, %v1508
    %v1603 = vmul.f32 %v1203, %v1509
    %v1604 = vmul.f32 %v1204, %v1508
    %v1605 = vmul.f32 %v1205, %v1509
    %v1606 = vmul.f32 %v1206, %v1508
    %v1607 = vmul.f32 %v1207, %v1509
    %v1608 = vmul.f32 %v1208, %v1508
    %v1609 = vmul.f32 %v1209, %v1509
    %v1610 = vmul.f32 %v1210, %v1508
    %v1611 = vmul.f32 %v1211, %v1509
    %v1612 = vmul.f32 %v1212, %v1508
    %v1613 = vmul.f32 %v1213, %v1509
    %v1614 = vmul.f32 %v1214, %v1508
    %v1615 = vmul.f32 %v1215, %v1509
    %v1616 = vmul.f32 %v1216, %v1508
    %v1617 = vmul.f32 %v1217, %v1509
    %v1618 = vmul.f32 %v1218, %v1508
    %v1619 = vmul.f32 %v1219, %v1509
    %v1620 = vmul.f32 %v1220, %v1508
    %v1621 = vmul.f32 %v1221, %v1509
    %v1622 = vmul.f32 %v1222, %v1508
    %v1623 = vmul.f32 %v1223, %v1509
    %v1624 = vmul.f32 %v1224, %v1508
    %v1625 = vmul.f32 %v1225, %v1509
    %v1626 = vmul.f32 %v1226, %v1508
    %v1627 = vmul.f32 %v1227, %v1509
    %v1628 = vmul.f32 %v1228, %v1508
    %v1629 = vmul.f32 %v1229, %v1509
    %v1630 = vmul.f32 %v1230, %v1508
    %v1631 = vmul.f32 %v1231, %v1509
    %v1632 = vmul.f32 %v1232, %v1508
    %v1633 = vmul.f32 %v1233, %v1509
    %v1634 = vmul.f32 %v1234, %v1508
    %v1635 = vmul.f32 %v1235, %v1509
    %v1636 = vmul.f32 %v1236, %v1508
    %v1637 = vmul.f32 %v1237, %v1509
    %v1638 = vxor.u32 %v1510, 2147483648
    %v1639 = vxor.u32 %v1511, 2147483648
    %v1640 = vxor.u32 %v1512, 2147483648
    %v1641 = vxor.u32 %v1513, 2147483648
    %v1642 = vxor.u32 %v1514, 2147483648
    %v1643 = vxor.u32 %v1515, 2147483648
    %v1644 = vxor.u32 %v1516, 2147483648
    %v1645 = vxor.u32 %v1517, 2147483648
    %v1646 = vxor.u32 %v1518, 2147483648
    %v1647 = vxor.u32 %v1519, 2147483648
    %v1648 = vxor.u32 %v1520, 2147483648
    %v1649 = vxor.u32 %v1521, 2147483648
    %v1650 = vxor.u32 %v1522, 2147483648
    %v1651 = vxor.u32 %v1523, 2147483648
    %v1652 = vxor.u32 %v1524, 2147483648
    %v1653 = vxor.u32 %v1525, 2147483648
    %v1654 = vxor.u32 %v1526, 2147483648
    %v1655 = vxor.u32 %v1527, 2147483648
    %v1656 = vxor.u32 %v1528, 2147483648
    %v1657 = vxor.u32 %v1529, 2147483648
    %v1658 = vxor.u32 %v1530, 2147483648
    %v1659 = vxor.u32 %v1531, 2147483648
    %v1660 = vxor.u32 %v1532, 2147483648
    %v1661 = vxor.u32 %v1533, 2147483648
    %v1662 = vxor.u32 %v1534, 2147483648
    %v1663 = vxor.u32 %v1535, 2147483648
    %v1664 = vxor.u32 %v1536, 2147483648
    %v1665 = vxor.u32 %v1537, 2147483648
    %v1666 = vxor.u32 %v1538, 2147483648
    %v1667 = vxor.u32 %v1539, 2147483648
    %v1668 = vxor.u32 %v1540, 2147483648
    %v1669 = vxor.u32 %v1541, 2147483648
    %v1670 = vxor.u32 %v1542, 2147483648
    %v1671 = vxor.u32 %v1543, 2147483648
    %v1672 = vxor.u32 %v1544, 2147483648
    %v1673 = vxor.u32 %v1545, 2147483648
    %v1674 = vxor.u32 %v1546, 2147483648
    %v1675 = vxor.u32 %v1547, 2147483648
    %v1676 = vxor.u32 %v1548, 2147483648
    %v1677 = vxor.u32 %v1549, 2147483648
    %v1678 = vxor.u32 %v1550, 2147483648
    %v1679 = vxor.u32 %v1551, 2147483648
    %v1680 = vxor.u32 %v1552, 2147483648
    %v1681 = vxor.u32 %v1553, 2147483648
    %v1682 = vxor.u32 %v1554, 2147483648
    %v1683 = vxor.u32 %v1555, 2147483648
    %v1684 = vxor.u32 %v1556, 2147483648
    %v1685 = vxor.u32 %v1557, 2147483648
    %v1686 = vxor.u32 %v1558, 2147483648
    %v1687 = vxor.u32 %v1559, 2147483648
    %v1688 = vxor.u32 %v1560, 2147483648
    %v1689 = vxor.u32 %v1561, 2147483648
    %v1690 = vxor.u32 %v1562, 2147483648
    %v1691 = vxor.u32 %v1563, 2147483648
    %v1692 = vxor.u32 %v1564, 2147483648
    %v1693 = vxor.u32 %v1565, 2147483648
    %v1694 = vxor.u32 %v1566, 2147483648
    %v1695 = vxor.u32 %v1567, 2147483648
    %v1696 = vxor.u32 %v1568, 2147483648
    %v1697 = vxor.u32 %v1569, 2147483648
    %v1698 = vxor.u32 %v1570, 2147483648
    %v1699 = vxor.u32 %v1571, 2147483648
    %v1700 = vxor.u32 %v1572, 2147483648
    %v1701 = vxor.u32 %v1573, 2147483648
    %v1702 = vxor.u32 %v1574, 2147483648
    %v1703 = vxor.u32 %v1575, 2147483648
    %v1704 = vxor.u32 %v1576, 2147483648
    %v1705 = vxor.u32 %v1577, 2147483648
    %v1706 = vxor.u32 %v1578, 2147483648
    %v1707 = vxor.u32 %v1579, 2147483648
    %v1708 = vxor.u32 %v1580, 2147483648
    %v1709 = vxor.u32 %v1581, 2147483648
    %v1710 = vxor.u32 %v1582, 2147483648
    %v1711 = vxor.u32 %v1583, 2147483648
    %v1712 = vxor.u32 %v1584, 2147483648
    %v1713 = vxor.u32 %v1585, 2147483648
    %v1714 = vxor.u32 %v1586, 2147483648
    %v1715 = vxor.u32 %v1587, 2147483648
    %v1716 = vxor.u32 %v1588, 2147483648
    %v1717 = vxor.u32 %v1589, 2147483648
    %v1718 = vxor.u32 %v1590, 2147483648
    %v1719 = vxor.u32 %v1591, 2147483648
    %v1720 = vxor.u32 %v1592, 2147483648
    %v1721 = vxor.u32 %v1593, 2147483648
    %v1722 = vxor.u32 %v1594, 2147483648
    %v1723 = vxor.u32 %v1595, 2147483648
    %v1724 = vxor.u32 %v1596, 2147483648
    %v1725 = vxor.u32 %v1597, 2147483648
    %v1726 = vxor.u32 %v1598, 2147483648
    %v1727 = vxor.u32 %v1599, 2147483648
    %v1728 = vxor.u32 %v1600, 2147483648
    %v1729 = vxor.u32 %v1601, 2147483648
    %v1730 = vxor.u32 %v1602, 2147483648
    %v1731 = vxor.u32 %v1603, 2147483648
    %v1732 = vxor.u32 %v1604, 2147483648
    %v1733 = vxor.u32 %v1605, 2147483648
    %v1734 = vxor.u32 %v1606, 2147483648
    %v1735 = vxor.u32 %v1607, 2147483648
    %v1736 = vxor.u32 %v1608, 2147483648
    %v1737 = vxor.u32 %v1609, 2147483648
    %v1738 = vxor.u32 %v1610, 2147483648
    %v1739 = vxor.u32 %v1611, 2147483648
    %v1740 = vxor.u32 %v1612, 2147483648
    %v1741 = vxor.u32 %v1613, 2147483648
    %v1742 = vxor.u32 %v1614, 2147483648
    %v1743 = vxor.u32 %v1615, 2147483648
    %v1744 = vxor.u32 %v1616, 2147483648
    %v1745 = vxor.u32 %v1617, 2147483648
    %v1746 = vxor.u32 %v1618, 2147483648
    %v1747 = vxor.u32 %v1619, 2147483648
    %v1748 = vxor.u32 %v1620, 2147483648
    %v1749 = vxor.u32 %v1621, 2147483648
    %v1750 = vxor.u32 %v1622, 2147483648
    %v1751 = vxor.u32 %v1623, 2147483648
    %v1752 = vxor.u32 %v1624, 2147483648
    %v1753 = vxor.u32 %v1625, 2147483648
    %v1754 = vxor.u32 %v1626, 2147483648
    %v1755 = vxor.u32 %v1627, 2147483648
    %v1756 = vxor.u32 %v1628, 2147483648
    %v1757 = vxor.u32 %v1629, 2147483648
    %v1758 = vxor.u32 %v1630, 2147483648
    %v1759 = vxor.u32 %v1631, 2147483648
    %v1760 = vxor.u32 %v1632, 2147483648
    %v1761 = vxor.u32 %v1633, 2147483648
    %v1762 = vxor.u32 %v1634, 2147483648
    %v1763 = vxor.u32 %v1635, 2147483648
    %v1764 = vxor.u32 %v1636, 2147483648
    %v1765 = vxor.u32 %v1637, 2147483648
    %v1766 = vmul.f32 %v1638, 1.442695
    %v1767 = vpow.pop %v1766
    %v1768 = vmul.f32 %v1639, 1.442695
    %v1769 = vpow.pop %v1768
    %v1770 = vmul.f32 %v1640, 1.442695
    %v1771 = vpow.pop %v1770
    %v1772 = vmul.f32 %v1641, 1.442695
    %v1773 = vpow.pop %v1772
    %v1774 = vmul.f32 %v1642, 1.442695
    %v1775 = vpow.pop %v1774
    %v1776 = vmul.f32 %v1643, 1.442695
    %v1777 = vpow.pop %v1776
    %v1778 = vmul.f32 %v1644, 1.442695
    %v1779 = vpow.pop %v1778
    %v1780 = vmul.f32 %v1645, 1.442695
    %v1781 = vpow.pop %v1780
    %v1782 = vmul.f32 %v1646, 1.442695
    %v1783 = vpow.pop %v1782
    %v1784 = vmul.f32 %v1647, 1.442695
    %v1785 = vpow.pop %v1784
    %v1786 = vmul.f32 %v1648, 1.442695
    %v1787 = vpow.pop %v1786
    %v1788 = vmul.f32 %v1649, 1.442695
    %v1789 = vpow.pop %v1788
    %v1790 = vmul.f32 %v1650, 1.442695
    %v1791 = vpow.pop %v1790
    %v1792 = vmul.f32 %v1651, 1.442695
    %v1793 = vpow.pop %v1792
    %v1794 = vmul.f32 %v1652, 1.442695
    %v1795 = vpow.pop %v1794
    %v1796 = vmul.f32 %v1653, 1.442695
    %v1797 = vpow.pop %v1796
    %v1798 = vmul.f32 %v1654, 1.442695
    %v1799 = vpow.pop %v1798
    %v1800 = vmul.f32 %v1655, 1.442695
    %v1801 = vpow.pop %v1800
    %v1802 = vmul.f32 %v1656, 1.442695
    %v1803 = vpow.pop %v1802
    %v1804 = vmul.f32 %v1657, 1.442695
    %v1805 = vpow.pop %v1804
    %v1806 = vmul.f32 %v1658, 1.442695
    %v1807 = vpow.pop %v1806
    %v1808 = vmul.f32 %v1659, 1.442695
    %v1809 = vpow.pop %v1808
    %v1810 = vmul.f32 %v1660, 1.442695
    %v1811 = vpow.pop %v1810
    %v1812 = vmul.f32 %v1661, 1.442695
    %v1813 = vpow.pop %v1812
    %v1814 = vmul.f32 %v1662, 1.442695
    %v1815 = vpow.pop %v1814
    %v1816 = vmul.f32 %v1663, 1.442695
    %v1817 = vpow.pop %v1816
    %v1818 = vmul.f32 %v1664, 1.442695
    %v1819 = vpow.pop %v1818
    %v1820 = vmul.f32 %v1665, 1.442695
    %v1821 = vpow.pop %v1820
    %v1822 = vmul.f32 %v1666, 1.442695
    %v1823 = vpow.pop %v1822
    %v1824 = vmul.f32 %v1667, 1.442695
    %v1825 = vpow.pop %v1824
    %v1826 = vmul.f32 %v1668, 1.442695
    %v1827 = vpow.pop %v1826
    %v1828 = vmul.f32 %v1669, 1.442695
    %v1829 = vpow.pop %v1828
    %v1830 = vmul.f32 %v1670, 1.442695
    %v1831 = vpow.pop %v1830
    %v1832 = vmul.f32 %v1671, 1.442695
    %v1833 = vpow.pop %v1832
    %v1834 = vmul.f32 %v1672, 1.442695
    %v1835 = vpow.pop %v1834
    %v1836 = vmul.f32 %v1673, 1.442695
    %v1837 = vpow.pop %v1836
    %v1838 = vmul.f32 %v1674, 1.442695
    %v1839 = vpow.pop %v1838
    %v1840 = vmul.f32 %v1675, 1.442695
    %v1841 = vpow.pop %v1840
    %v1842 = vmul.f32 %v1676, 1.442695
    %v1843 = vpow.pop %v1842
    %v1844 = vmul.f32 %v1677, 1.442695
    %v1845 = vpow.pop %v1844
    %v1846 = vmul.f32 %v1678, 1.442695
    %v1847 = vpow.pop %v1846
    %v1848 = vmul.f32 %v1679, 1.442695
    %v1849 = vpow.pop %v1848
    %v1850 = vmul.f32 %v1680, 1.442695
    %v1851 = vpow.pop %v1850
    %v1852 = vmul.f32 %v1681, 1.442695
    %v1853 = vpow.pop %v1852
    %v1854 = vmul.f32 %v1682, 1.442695
    %v1855 = vpow.pop %v1854
    %v1856 = vmul.f32 %v1683, 1.442695
    %v1857 = vpow.pop %v1856
    %v1858 = vmul.f32 %v1684, 1.442695
    %v1859 = vpow.pop %v1858
    %v1860 = vmul.f32 %v1685, 1.442695
    %v1861 = vpow.pop %v1860
    %v1862 = vmul.f32 %v1686, 1.442695
    %v1863 = vpow.pop %v1862
    %v1864 = vmul.f32 %v1687, 1.442695
    %v1865 = vpow.pop %v1864
    %v1866 = vmul.f32 %v1688, 1.442695
    %v1867 = vpow.pop %v1866
    %v1868 = vmul.f32 %v1689, 1.442695
    %v1869 = vpow.pop %v1868
    %v1870 = vmul.f32 %v1690, 1.442695
    %v1871 = vpow.pop %v1870
    %v1872 = vmul.f32 %v1691, 1.442695
    %v1873 = vpow.pop %v1872
    %v1874 = vmul.f32 %v1692, 1.442695
    %v1875 = vpow.pop %v1874
    %v1876 = vmul.f32 %v1693, 1.442695
    %v1877 = vpow.pop %v1876
    %v1878 = vmul.f32 %v1694, 1.442695
    %v1879 = vpow.pop %v1878
    %v1880 = vmul.f32 %v1695, 1.442695
    %v1881 = vpow.pop %v1880
    %v1882 = vmul.f32 %v1696, 1.442695
    %v1883 = vpow.pop %v1882
    %v1884 = vmul.f32 %v1697, 1.442695
    %v1885 = vpow.pop %v1884
    %v1886 = vmul.f32 %v1698, 1.442695
    %v1887 = vpow.pop %v1886
    %v1888 = vmul.f32 %v1699, 1.442695
    %v1889 = vpow.pop %v1888
    %v1890 = vmul.f32 %v1700, 1.442695
    %v1891 = vpow.pop %v1890
    %v1892 = vmul.f32 %v1701, 1.442695
    %v1893 = vpow.pop %v1892
    %v1894 = vmul.f32 %v1702, 1.442695
    %v1895 = vpow.pop %v1894
    %v1896 = vmul.f32 %v1703, 1.442695
    %v1897 = vpow.pop %v1896
    %v1898 = vmul.f32 %v1704, 1.442695
    %v1899 = vpow.pop %v1898
    %v1900 = vmul.f32 %v1705, 1.442695
    %v1901 = vpow.pop %v1900
    %v1902 = vmul.f32 %v1706, 1.442695
    %v1903 = vpow.pop %v1902
    %v1904 = vmul.f32 %v1707, 1.442695
    %v1905 = vpow.pop %v1904
    %v1906 = vmul.f32 %v1708, 1.442695
    %v1907 = vpow.pop %v1906
    %v1908 = vmul.f32 %v1709, 1.442695
    %v1909 = vpow.pop %v1908
    %v1910 = vmul.f32 %v1710, 1.442695
    %v1911 = vpow.pop %v1910
    %v1912 = vmul.f32 %v1711, 1.442695
    %v1913 = vpow.pop %v1912
    %v1914 = vmul.f32 %v1712, 1.442695
    %v1915 = vpow.pop %v1914
    %v1916 = vmul.f32 %v1713, 1.442695
    %v1917 = vpow.pop %v1916
    %v1918 = vmul.f32 %v1714, 1.442695
    %v1919 = vpow.pop %v1918
    %v1920 = vmul.f32 %v1715, 1.442695
    %v1921 = vpow.pop %v1920
    %v1922 = vmul.f32 %v1716, 1.442695
    %v1923 = vpow.pop %v1922
    %v1924 = vmul.f32 %v1717, 1.442695
    %v1925 = vpow.pop %v1924
    %v1926 = vmul.f32 %v1718, 1.442695
    %v1927 = vpow.pop %v1926
    %v1928 = vmul.f32 %v1719, 1.442695
    %v1929 = vpow.pop %v1928
    %v1930 = vmul.f32 %v1720, 1.442695
    %v1931 = vpow.pop %v1930
    %v1932 = vmul.f32 %v1721, 1.442695
    %v1933 = vpow.pop %v1932
    %v1934 = vmul.f32 %v1722, 1.442695
    %v1935 = vpow.pop %v1934
    %v1936 = vmul.f32 %v1723, 1.442695
    %v1937 = vpow.pop %v1936
    %v1938 = vmul.f32 %v1724, 1.442695
    %v1939 = vpow.pop %v1938
    %v1940 = vmul.f32 %v1725, 1.442695
    %v1941 = vpow.pop %v1940
    %v1942 = vmul.f32 %v1726, 1.442695
    %v1943 = vpow.pop %v1942
    %v1944 = vmul.f32 %v1727, 1.442695
    %v1945 = vpow.pop %v1944
    %v1946 = vmul.f32 %v1728, 1.442695
    %v1947 = vpow.pop %v1946
    %v1948 = vmul.f32 %v1729, 1.442695
    %v1949 = vpow.pop %v1948
    %v1950 = vmul.f32 %v1730, 1.442695
    %v1951 = vpow.pop %v1950
    %v1952 = vmul.f32 %v1731, 1.442695
    %v1953 = vpow.pop %v1952
    %v1954 = vmul.f32 %v1732, 1.442695
    %v1955 = vpow.pop %v1954
    %v1956 = vmul.f32 %v1733, 1.442695
    %v1957 = vpow.pop %v1956
    %v1958 = vmul.f32 %v1734, 1.442695
    %v1959 = vpow.pop %v1958
    %v1960 = vmul.f32 %v1735, 1.442695
    %v1961 = vpow.pop %v1960
    %v1962 = vmul.f32 %v1736, 1.442695
    %v1963 = vpow.pop %v1962
    %v1964 = vmul.f32 %v1737, 1.442695
    %v1965 = vpow.pop %v1964
    %v1966 = vmul.f32 %v1738, 1.442695
    %v1967 = vpow.pop %v1966
    %v1968 = vmul.f32 %v1739, 1.442695
    %v1969 = vpow.pop %v1968
    %v1970 = vmul.f32 %v1740, 1.442695
    %v1971 = vpow.pop %v1970
    %v1972 = vmul.f32 %v1741, 1.442695
    %v1973 = vpow.pop %v1972
    %v1974 = vmul.f32 %v1742, 1.442695
    %v1975 = vpow.pop %v1974
    %v1976 = vmul.f32 %v1743, 1.442695
    %v1977 = vpow.pop %v1976
    %v1978 = vmul.f32 %v1744, 1.442695
    %v1979 = vpow.pop %v1978
    %v1980 = vmul.f32 %v1745, 1.442695
    %v1981 = vpow.pop %v1980
    %v1982 = vmul.f32 %v1746, 1.442695
    %v1983 = vpow.pop %v1982
    %v1984 = vmul.f32 %v1747, 1.442695
    %v1985 = vpow.pop %v1984
    %v1986 = vmul.f32 %v1748, 1.442695
    %v1987 = vpow.pop %v1986
    %v1988 = vmul.f32 %v1749, 1.442695
    %v1989 = vpow.pop %v1988
    %v1990 = vmul.f32 %v1750, 1.442695
    %v1991 = vpow.pop %v1990
    %v1992 = vmul.f32 %v1751, 1.442695
    %v1993 = vpow.pop %v1992
    %v1994 = vmul.f32 %v1752, 1.442695
    %v1995 = vpow.pop %v1994
    %v1996 = vmul.f32 %v1753, 1.442695
    %v1997 = vpow.pop %v1996
    %v1998 = vmul.f32 %v1754, 1.442695
    %v1999 = vpow.pop %v1998
    %v2000 = vmul.f32 %v1755, 1.442695
    %v2001 = vpow.pop %v2000
    %v2002 = vmul.f32 %v1756, 1.442695
    %v2003 = vpow.pop %v2002
    %v2004 = vmul.f32 %v1757, 1.442695
    %v2005 = vpow.pop %v2004
    %v2006 = vmul.f32 %v1758, 1.442695
    %v2007 = vpow.pop %v2006
    %v2008 = vmul.f32 %v1759, 1.442695
    %v2009 = vpow.pop %v2008
    %v2010 = vmul.f32 %v1760, 1.442695
    %v2011 = vpow.pop %v2010
    %v2012 = vmul.f32 %v1761, 1.442695
    %v2013 = vpow.pop %v2012
    %v2014 = vmul.f32 %v1762, 1.442695
    %v2015 = vpow.pop %v2014
    %v2016 = vmul.f32 %v1763, 1.442695
    %v2017 = vpow.pop %v2016
    %v2018 = vmul.f32 %v1764, 1.442695
    %v2019 = vpow.pop %v2018
    %v2020 = vmul.f32 %v1765, 1.442695
    %v2021 = vpow.pop %v2020
    %v2022 = vadd.f32 %v1767, 1.0
    %v2023 = vadd.f32 %v1769, 1.0
    %v2024 = vadd.f32 %v1771, 1.0
    %v2025 = vadd.f32 %v1773, 1.0
    %v2026 = vadd.f32 %v1775, 1.0
    %v2027 = vadd.f32 %v1777, 1.0
    %v2028 = vadd.f32 %v1779, 1.0
    %v2029 = vadd.f32 %v1781, 1.0
    %v2030 = vadd.f32 %v1783, 1.0
    %v2031 = vadd.f32 %v1785, 1.0
    %v2032 = vadd.f32 %v1787, 1.0
    %v2033 = vadd.f32 %v1789, 1.0
    %v2034 = vadd.f32 %v1791, 1.0
    %v2035 = vadd.f32 %v1793, 1.0
    %v2036 = vadd.f32 %v1795, 1.0
    %v2037 = vadd.f32 %v1797, 1.0
    %v2038 = vadd.f32 %v1799, 1.0
    %v2039 = vadd.f32 %v1801, 1.0
    %v2040 = vadd.f32 %v1803, 1.0
    %v2041 = vadd.f32 %v1805, 1.0
    %v2042 = vadd.f32 %v1807, 1.0
    %v2043 = vadd.f32 %v1809, 1.0
    %v2044 = vadd.f32 %v1811, 1.0
    %v2045 = vadd.f32 %v1813, 1.0
    %v2046 = vadd.f32 %v1815, 1.0
    %v2047 = vadd.f32 %v1817, 1.0
    %v2048 = vadd.f32 %v1819, 1.0
    %v2049 = vadd.f32 %v1821, 1.0
    %v2050 = vadd.f32 %v1823, 1.0
    %v2051 = vadd.f32 %v1825, 1.0
    %v2052 = vadd.f32 %v1827, 1.0
    %v2053 = vadd.f32 %v1829, 1.0
    %v2054 = vadd.f32 %v1831, 1.0
    %v2055 = vadd.f32 %v1833, 1.0
    %v2056 = vadd.f32 %v1835, 1.0
    %v2057 = vadd.f32 %v1837, 1.0
    %v2058 = vadd.f32 %v1839, 1.0
    %v2059 = vadd.f32 %v1841, 1.0
    %v2060 = vadd.f32 %v1843, 1.0
    %v2061 = vadd.f32 %v1845, 1.0
    %v2062 = vadd.f32 %v1847, 1.0
    %v2063 = vadd.f32 %v1849, 1.0
    %v2064 = vadd.f32 %v1851, 1.0
    %v2065 = vadd.f32 %v1853, 1.0
    %v2066 = vadd.f32 %v1855, 1.0
    %v2067 = vadd.f32 %v1857, 1.0
    %v2068 = vadd.f32 %v1859, 1.0
    %v2069 = vadd.f32 %v1861, 1.0
    %v2070 = vadd.f32 %v1863, 1.0
    %v2071 = vadd.f32 %v1865, 1.0
    %v2072 = vadd.f32 %v1867, 1.0
    %v2073 = vadd.f32 %v1869, 1.0
    %v2074 = vadd.f32 %v1871, 1.0
    %v2075 = vadd.f32 %v1873, 1.0
    %v2076 = vadd.f32 %v1875, 1.0
    %v2077 = vadd.f32 %v1877, 1.0
    %v2078 = vadd.f32 %v1879, 1.0
    %v2079 = vadd.f32 %v1881, 1.0
    %v2080 = vadd.f32 %v1883, 1.0
    %v2081 = vadd.f32 %v1885, 1.0
    %v2082 = vadd.f32 %v1887, 1.0
    %v2083 = vadd.f32 %v1889, 1.0
    %v2084 = vadd.f32 %v1891, 1.0
    %v2085 = vadd.f32 %v1893, 1.0
    %v2086 = vadd.f32 %v1895, 1.0
    %v2087 = vadd.f32 %v1897, 1.0
    %v2088 = vadd.f32 %v1899, 1.0
    %v2089 = vadd.f32 %v1901, 1.0
    %v2090 = vadd.f32 %v1903, 1.0
    %v2091 = vadd.f32 %v1905, 1.0
    %v2092 = vadd.f32 %v1907, 1.0
    %v2093 = vadd.f32 %v1909, 1.0
    %v2094 = vadd.f32 %v1911, 1.0
    %v2095 = vadd.f32 %v1913, 1.0
    %v2096 = vadd.f32 %v1915, 1.0
    %v2097 = vadd.f32 %v1917, 1.0
    %v2098 = vadd.f32 %v1919, 1.0
    %v2099 = vadd.f32 %v1921, 1.0
    %v2100 = vadd.f32 %v1923, 1.0
    %v2101 = vadd.f32 %v1925, 1.0
    %v2102 = vadd.f32 %v1927, 1.0
    %v2103 = vadd.f32 %v1929, 1.0
    %v2104 = vadd.f32 %v1931, 1.0
    %v2105 = vadd.f32 %v1933, 1.0
    %v2106 = vadd.f32 %v1935, 1.0
    %v2107 = vadd.f32 %v1937, 1.0
    %v2108 = vadd.f32 %v1939, 1.0
    %v2109 = vadd.f32 %v1941, 1.0
    %v2110 = vadd.f32 %v1943, 1.0
    %v2111 = vadd.f32 %v1945, 1.0
    %v2112 = vadd.f32 %v1947, 1.0
    %v2113 = vadd.f32 %v1949, 1.0
    %v2114 = vadd.f32 %v1951, 1.0
    %v2115 = vadd.f32 %v1953, 1.0
    %v2116 = vadd.f32 %v1955, 1.0
    %v2117 = vadd.f32 %v1957, 1.0
    %v2118 = vadd.f32 %v1959, 1.0
    %v2119 = vadd.f32 %v1961, 1.0
    %v2120 = vadd.f32 %v1963, 1.0
    %v2121 = vadd.f32 %v1965, 1.0
    %v2122 = vadd.f32 %v1967, 1.0
    %v2123 = vadd.f32 %v1969, 1.0
    %v2124 = vadd.f32 %v1971, 1.0
    %v2125 = vadd.f32 %v1973, 1.0
    %v2126 = vadd.f32 %v1975, 1.0
    %v2127 = vadd.f32 %v1977, 1.0
    %v2128 = vadd.f32 %v1979, 1.0
    %v2129 = vadd.f32 %v1981, 1.0
    %v2130 = vadd.f32 %v1983, 1.0
    %v2131 = vadd.f32 %v1985, 1.0
    %v2132 = vadd.f32 %v1987, 1.0
    %v2133 = vadd.f32 %v1989, 1.0
    %v2134 = vadd.f32 %v1991, 1.0
    %v2135 = vadd.f32 %v1993, 1.0
    %v2136 = vadd.f32 %v1995, 1.0
    %v2137 = vadd.f32 %v1997, 1.0
    %v2138 = vadd.f32 %v1999, 1.0
    %v2139 = vadd.f32 %v2001, 1.0
    %v2140 = vadd.f32 %v2003, 1.0
    %v2141 = vadd.f32 %v2005, 1.0
    %v2142 = vadd.f32 %v2007, 1.0
    %v2143 = vadd.f32 %v2009, 1.0
    %v2144 = vadd.f32 %v2011, 1.0
    %v2145 = vadd.f32 %v2013, 1.0
    %v2146 = vadd.f32 %v2015, 1.0
    %v2147 = vadd.f32 %v2017, 1.0
    %v2148 = vadd.f32 %v2019, 1.0
    %v2149 = vadd.f32 %v2021, 1.0
    %v2150 = vrcp.pop %v2022
    %v2151 = vmul.f32 1.0, %v2150
    %v2152 = vrcp.pop %v2023
    %v2153 = vmul.f32 1.0, %v2152
    %v2154 = vrcp.pop %v2024
    %v2155 = vmul.f32 1.0, %v2154
    %v2156 = vrcp.pop %v2025
    %v2157 = vmul.f32 1.0, %v2156
    %v2158 = vrcp.pop %v2026
    %v2159 = vmul.f32 1.0, %v2158
    %v2160 = vrcp.pop %v2027
    %v2161 = vmul.f32 1.0, %v2160
    %v2162 = vrcp.pop %v2028
    %v2163 = vmul.f32 1.0, %v2162
    %v2164 = vrcp.pop %v2029
    %v2165 = vmul.f32 1.0, %v2164
    %v2166 = vrcp.pop %v2030
    %v2167 = vmul.f32 1.0, %v2166
    %v2168 = vrcp.pop %v2031
    %v2169 = vmul.f32 1.0, %v2168
    %v2170 = vrcp.pop %v2032
    %v2171 = vmul.f32 1.0, %v2170
    %v2172 = vrcp.pop %v2033
    %v2173 = vmul.f32 1.0, %v2172
    %v2174 = vrcp.pop %v2034
    %v2175 = vmul.f32 1.0, %v2174
    %v2176 = vrcp.pop %v2035
    %v2177 = vmul.f32 1.0, %v2176
    %v2178 = vrcp.pop %v2036
    %v2179 = vmul.f32 1.0, %v2178
    %v2180 = vrcp.pop %v2037
    %v2181 = vmul.f32 1.0, %v2180
    %v2182 = vrcp.pop %v2038
    %v2183 = vmul.f32 1.0, %v2182
    %v2184 = vrcp.pop %v2039
    %v2185 = vmul.f32 1.0, %v2184
    %v2186 = vrcp.pop %v2040
    %v2187 = vmul.f32 1.0, %v2186
    %v2188 = vrcp.pop %v2041
    %v2189 = vmul.f32 1.0, %v2188
    %v2190 = vrcp.pop %v2042
    %v2191 = vmul.f32 1.0, %v2190
    %v2192 = vrcp.pop %v2043
    %v2193 = vmul.f32 1.0, %v2192
    %v2194 = vrcp.pop %v2044
    %v2195 = vmul.f32 1.0, %v2194
    %v2196 = vrcp.pop %v2045
    %v2197 = vmul.f32 1.0, %v2196
    %v2198 = vrcp.pop %v2046
    %v2199 = vmul.f32 1.0, %v2198
    %v2200 = vrcp.pop %v2047
    %v2201 = vmul.f32 1.0, %v2200
    %v2202 = vrcp.pop %v2048
    %v2203 = vmul.f32 1.0, %v2202
    %v2204 = vrcp.pop %v2049
    %v2205 = vmul.f32 1.0, %v2204
    %v2206 = vrcp.pop %v2050
    %v2207 = vmul.f32 1.0, %v2206
    %v2208 = vrcp.pop %v2051
    %v2209 = vmul.f32 1.0, %v2208
    %v2210 = vrcp.pop %v2052
    %v2211 = vmul.f32 1.0, %v2210
    %v2212 = vrcp.pop %v2053
    %v2213 = vmul.f32 1.0, %v2212
    %v2214 = vrcp.pop %v2054
    %v2215 = vmul.f32 1.0, %v2214
    %v2216 = vrcp.pop %v2055
    %v2217 = vmul.f32 1.0, %v2216
    %v2218 = vrcp.pop %v2056
    %v2219 = vmul.f32 1.0, %v2218
    %v2220 = vrcp.pop %v2057
    %v2221 = vmul.f32 1.0, %v2220
    %v2222 = vrcp.pop %v2058
    %v2223 = vmul.f32 1.0, %v2222
    %v2224 = vrcp.pop %v2059
    %v2225 = vmul.f32 1.0, %v2224
    %v2226 = vrcp.pop %v2060
    %v2227 = vmul.f32 1.0, %v2226
    %v2228 = vrcp.pop %v2061
    %v2229 = vmul.f32 1.0, %v2228
    %v2230 = vrcp.pop %v2062
    %v2231 = vmul.f32 1.0, %v2230
    %v2232 = vrcp.pop %v2063
    %v2233 = vmul.f32 1.0, %v2232
    %v2234 = vrcp.pop %v2064
    %v2235 = vmul.f32 1.0, %v2234
    %v2236 = vrcp.pop %v2065
    %v2237 = vmul.f32 1.0, %v2236
    %v2238 = vrcp.pop %v2066
    %v2239 = vmul.f32 1.0, %v2238
    %v2240 = vrcp.pop %v2067
    %v2241 = vmul.f32 1.0, %v2240
    %v2242 = vrcp.pop %v2068
    %v2243 = vmul.f32 1.0, %v2242
    %v2244 = vrcp.pop %v2069
    %v2245 = vmul.f32 1.0, %v2244
    %v2246 = vrcp.pop %v2070
    %v2247 = vmul.f32 1.0, %v2246
    %v2248 = vrcp.pop %v2071
    %v2249 = vmul.f32 1.0, %v2248
    %v2250 = vrcp.pop %v2072
    %v2251 = vmul.f32 1.0, %v2250
    %v2252 = vrcp.pop %v2073
    %v2253 = vmul.f32 1.0, %v2252
    %v2254 = vrcp.pop %v2074
    %v2255 = vmul.f32 1.0, %v2254
    %v2256 = vrcp.pop %v2075
    %v2257 = vmul.f32 1.0, %v2256
    %v2258 = vrcp.pop %v2076
    %v2259 = vmul.f32 1.0, %v2258
    %v2260 = vrcp.pop %v2077
    %v2261 = vmul.f32 1.0, %v2260
    %v2262 = vrcp.pop %v2078
    %v2263 = vmul.f32 1.0, %v2262
    %v2264 = vrcp.pop %v2079
    %v2265 = vmul.f32 1.0, %v2264
    %v2266 = vrcp.pop %v2080
    %v2267 = vmul.f32 1.0, %v2266
    %v2268 = vrcp.pop %v2081
    %v2269 = vmul.f32 1.0, %v2268
    %v2270 = vrcp.pop %v2082
    %v2271 = vmul.f32 1.0, %v2270
    %v2272 = vrcp.pop %v2083
    %v2273 = vmul.f32 1.0, %v2272
    %v2274 = vrcp.pop %v2084
    %v2275 = vmul.f32 1.0, %v2274
    %v2276 = vrcp.pop %v2085
    %v2277 = vmul.f32 1.0, %v2276
    %v2278 = vrcp.pop %v2086
    %v2279 = vmul.f32 1.0, %v2278
    %v2280 = vrcp.pop %v2087
    %v2281 = vmul.f32 1.0, %v2280
    %v2282 = vrcp.pop %v2088
    %v2283 = vmul.f32 1.0, %v2282
    %v2284 = vrcp.pop %v2089
    %v2285 = vmul.f32 1.0, %v2284
    %v2286 = vrcp.pop %v2090
    %v2287 = vmul.f32 1.0, %v2286
    %v2288 = vrcp.pop %v2091
    %v2289 = vmul.f32 1.0, %v2288
    %v2290 = vrcp.pop %v2092
    %v2291 = vmul.f32 1.0, %v2290
    %v2292 = vrcp.pop %v2093
    %v2293 = vmul.f32 1.0, %v2292
    %v2294 = vrcp.pop %v2094
    %v2295 = vmul.f32 1.0, %v2294
    %v2296 = vrcp.pop %v2095
    %v2297 = vmul.f32 1.0, %v2296
    %v2298 = vrcp.pop %v2096
    %v2299 = vmul.f32 1.0, %v2298
    %v2300 = vrcp.pop %v2097
    %v2301 = vmul.f32 1.0, %v2300
    %v2302 = vrcp.pop %v2098
    %v2303 = vmul.f32 1.0, %v2302
    %v2304 = vrcp.pop %v2099
    %v2305 = vmul.f32 1.0, %v2304
    %v2306 = vrcp.pop %v2100
    %v2307 = vmul.f32 1.0, %v2306
    %v2308 = vrcp.pop %v2101
    %v2309 = vmul.f32 1.0, %v2308
    %v2310 = vrcp.pop %v2102
    %v2311 = vmul.f32 1.0, %v2310
    %v2312 = vrcp.pop %v2103
    %v2313 = vmul.f32 1.0, %v2312
    %v2314 = vrcp.pop %v2104
    %v2315 = vmul.f32 1.0, %v2314
    %v2316 = vrcp.pop %v2105
    %v2317 = vmul.f32 1.0, %v2316
    %v2318 = vrcp.pop %v2106
    %v2319 = vmul.f32 1.0, %v2318
    %v2320 = vrcp.pop %v2107
    %v2321 = vmul.f32 1.0, %v2320
    %v2322 = vrcp.pop %v2108
    %v2323 = vmul.f32 1.0, %v2322
    %v2324 = vrcp.pop %v2109
    %v2325 = vmul.f32 1.0, %v2324
    %v2326 = vrcp.pop %v2110
    %v2327 = vmul.f32 1.0, %v2326
    %v2328 = vrcp.pop %v2111
    %v2329 = vmul.f32 1.0, %v2328
    %v2330 = vrcp.pop %v2112
    %v2331 = vmul.f32 1.0, %v2330
    %v2332 = vrcp.pop %v2113
    %v2333 = vmul.f32 1.0, %v2332
    %v2334 = vrcp.pop %v2114
    %v2335 = vmul.f32 1.0, %v2334
    %v2336 = vrcp.pop %v2115
    %v2337 = vmul.f32 1.0, %v2336
    %v2338 = vrcp.pop %v2116
    %v2339 = vmul.f32 1.0, %v2338
    %v2340 = vrcp.pop %v2117
    %v2341 = vmul.f32 1.0, %v2340
    %v2342 = vrcp.pop %v2118
    %v2343 = vmul.f32 1.0, %v2342
    %v2344 = vrcp.pop %v2119
    %v2345 = vmul.f32 1.0, %v2344
    %v2346 = vrcp.pop %v2120
    %v2347 = vmul.f32 1.0, %v2346
    %v2348 = vrcp.pop %v2121
    %v2349 = vmul.f32 1.0, %v2348
    %v2350 = vrcp.pop %v2122
    %v2351 = vmul.f32 1.0, %v2350
    %v2352 = vrcp.pop %v2123
    %v2353 = vmul.f32 1.0, %v2352
    %v2354 = vrcp.pop %v2124
    %v2355 = vmul.f32 1.0, %v2354
    %v2356 = vrcp.pop %v2125
    %v2357 = vmul.f32 1.0, %v2356
    %v2358 = vrcp.pop %v2126
    %v2359 = vmul.f32 1.0, %v2358
    %v2360 = vrcp.pop %v2127
    %v2361 = vmul.f32 1.0, %v2360
    %v2362 = vrcp.pop %v2128
    %v2363 = vmul.f32 1.0, %v2362
    %v2364 = vrcp.pop %v2129
    %v2365 = vmul.f32 1.0, %v2364
    %v2366 = vrcp.pop %v2130
    %v2367 = vmul.f32 1.0, %v2366
    %v2368 = vrcp.pop %v2131
    %v2369 = vmul.f32 1.0, %v2368
    %v2370 = vrcp.pop %v2132
    %v2371 = vmul.f32 1.0, %v2370
    %v2372 = vrcp.pop %v2133
    %v2373 = vmul.f32 1.0, %v2372
    %v2374 = vrcp.pop %v2134
    %v2375 = vmul.f32 1.0, %v2374
    %v2376 = vrcp.pop %v2135
    %v2377 = vmul.f32 1.0, %v2376
    %v2378 = vrcp.pop %v2136
    %v2379 = vmul.f32 1.0, %v2378
    %v2380 = vrcp.pop %v2137
    %v2381 = vmul.f32 1.0, %v2380
    %v2382 = vrcp.pop %v2138
    %v2383 = vmul.f32 1.0, %v2382
    %v2384 = vrcp.pop %v2139
    %v2385 = vmul.f32 1.0, %v2384
    %v2386 = vrcp.pop %v2140
    %v2387 = vmul.f32 1.0, %v2386
    %v2388 = vrcp.pop %v2141
    %v2389 = vmul.f32 1.0, %v2388
    %v2390 = vrcp.pop %v2142
    %v2391 = vmul.f32 1.0, %v2390
    %v2392 = vrcp.pop %v2143
    %v2393 = vmul.f32 1.0, %v2392
    %v2394 = vrcp.pop %v2144
    %v2395 = vmul.f32 1.0, %v2394
    %v2396 = vrcp.pop %v2145
    %v2397 = vmul.f32 1.0, %v2396
    %v2398 = vrcp.pop %v2146
    %v2399 = vmul.f32 1.0, %v2398
    %v2400 = vrcp.pop %v2147
    %v2401 = vmul.f32 1.0, %v2400
    %v2402 = vrcp.pop %v2148
    %v2403 = vmul.f32 1.0, %v2402
    %v2404 = vrcp.pop %v2149
    %v2405 = vmul.f32 1.0, %v2404
    %v2406 = vmul.f32 %v1510, %v2151
    %v2407 = vmul.f32 %v1511, %v2153
    %v2408 = vmul.f32 %v1512, %v2155
    %v2409 = vmul.f32 %v1513, %v2157
    %v2410 = vmul.f32 %v1514, %v2159
    %v2411 = vmul.f32 %v1515, %v2161
    %v2412 = vmul.f32 %v1516, %v2163
    %v2413 = vmul.f32 %v1517, %v2165
    %v2414 = vmul.f32 %v1518, %v2167
    %v2415 = vmul.f32 %v1519, %v2169
    %v2416 = vmul.f32 %v1520, %v2171
    %v2417 = vmul.f32 %v1521, %v2173
    %v2418 = vmul.f32 %v1522, %v2175
    %v2419 = vmul.f32 %v1523, %v2177
    %v2420 = vmul.f32 %v1524, %v2179
    %v2421 = vmul.f32 %v1525, %v2181
    %v2422 = vmul.f32 %v1526, %v2183
    %v2423 = vmul.f32 %v1527, %v2185
    %v2424 = vmul.f32 %v1528, %v2187
    %v2425 = vmul.f32 %v1529, %v2189
    %v2426 = vmul.f32 %v1530, %v2191
    %v2427 = vmul.f32 %v1531, %v2193
    %v2428 = vmul.f32 %v1532, %v2195
    %v2429 = vmul.f32 %v1533, %v2197
    %v2430 = vmul.f32 %v1534, %v2199
    %v2431 = vmul.f32 %v1535, %v2201
    %v2432 = vmul.f32 %v1536, %v2203
    %v2433 = vmul.f32 %v1537, %v2205
    %v2434 = vmul.f32 %v1538, %v2207
    %v2435 = vmul.f32 %v1539, %v2209
    %v2436 = vmul.f32 %v1540, %v2211
    %v2437 = vmul.f32 %v1541, %v2213
    %v2438 = vmul.f32 %v1542, %v2215
    %v2439 = vmul.f32 %v1543, %v2217
    %v2440 = vmul.f32 %v1544, %v2219
    %v2441 = vmul.f32 %v1545, %v2221
    %v2442 = vmul.f32 %v1546, %v2223
    %v2443 = vmul.f32 %v1547, %v2225
    %v2444 = vmul.f32 %v1548, %v2227
    %v2445 = vmul.f32 %v1549, %v2229
    %v2446 = vmul.f32 %v1550, %v2231
    %v2447 = vmul.f32 %v1551, %v2233
    %v2448 = vmul.f32 %v1552, %v2235
    %v2449 = vmul.f32 %v1553, %v2237
    %v2450 = vmul.f32 %v1554, %v2239
    %v2451 = vmul.f32 %v1555, %v2241
    %v2452 = vmul.f32 %v1556, %v2243
    %v2453 = vmul.f32 %v1557, %v2245
    %v2454 = vmul.f32 %v1558, %v2247
    %v2455 = vmul.f32 %v1559, %v2249
    %v2456 = vmul.f32 %v1560, %v2251
    %v2457 = vmul.f32 %v1561, %v2253
    %v2458 = vmul.f32 %v1562, %v2255
    %v2459 = vmul.f32 %v1563, %v2257
    %v2460 = vmul.f32 %v1564, %v2259
    %v2461 = vmul.f32 %v1565, %v2261
    %v2462 = vmul.f32 %v1566, %v2263
    %v2463 = vmul.f32 %v1567, %v2265
    %v2464 = vmul.f32 %v1568, %v2267
    %v2465 = vmul.f32 %v1569, %v2269
    %v2466 = vmul.f32 %v1570, %v2271
    %v2467 = vmul.f32 %v1571, %v2273
    %v2468 = vmul.f32 %v1572, %v2275
    %v2469 = vmul.f32 %v1573, %v2277
    %v2470 = vmul.f32 %v1574, %v2279
    %v2471 = vmul.f32 %v1575, %v2281
    %v2472 = vmul.f32 %v1576, %v2283
    %v2473 = vmul.f32 %v1577, %v2285
    %v2474 = vmul.f32 %v1578, %v2287
    %v2475 = vmul.f32 %v1579, %v2289
    %v2476 = vmul.f32 %v1580, %v2291
    %v2477 = vmul.f32 %v1581, %v2293
    %v2478 = vmul.f32 %v1582, %v2295
    %v2479 = vmul.f32 %v1583, %v2297
    %v2480 = vmul.f32 %v1584, %v2299
    %v2481 = vmul.f32 %v1585, %v2301
    %v2482 = vmul.f32 %v1586, %v2303
    %v2483 = vmul.f32 %v1587, %v2305
    %v2484 = vmul.f32 %v1588, %v2307
    %v2485 = vmul.f32 %v1589, %v2309
    %v2486 = vmul.f32 %v1590, %v2311
    %v2487 = vmul.f32 %v1591, %v2313
    %v2488 = vmul.f32 %v1592, %v2315
    %v2489 = vmul.f32 %v1593, %v2317
    %v2490 = vmul.f32 %v1594, %v2319
    %v2491 = vmul.f32 %v1595, %v2321
    %v2492 = vmul.f32 %v1596, %v2323
    %v2493 = vmul.f32 %v1597, %v2325
    %v2494 = vmul.f32 %v1598, %v2327
    %v2495 = vmul.f32 %v1599, %v2329
    %v2496 = vmul.f32 %v1600, %v2331
    %v2497 = vmul.f32 %v1601, %v2333
    %v2498 = vmul.f32 %v1602, %v2335
    %v2499 = vmul.f32 %v1603, %v2337
    %v2500 = vmul.f32 %v1604, %v2339
    %v2501 = vmul.f32 %v1605, %v2341
    %v2502 = vmul.f32 %v1606, %v2343
    %v2503 = vmul.f32 %v1607, %v2345
    %v2504 = vmul.f32 %v1608, %v2347
    %v2505 = vmul.f32 %v1609, %v2349
    %v2506 = vmul.f32 %v1610, %v2351
    %v2507 = vmul.f32 %v1611, %v2353
    %v2508 = vmul.f32 %v1612, %v2355
    %v2509 = vmul.f32 %v1613, %v2357
    %v2510 = vmul.f32 %v1614, %v2359
    %v2511 = vmul.f32 %v1615, %v2361
    %v2512 = vmul.f32 %v1616, %v2363
    %v2513 = vmul.f32 %v1617, %v2365
    %v2514 = vmul.f32 %v1618, %v2367
    %v2515 = vmul.f32 %v1619, %v2369
    %v2516 = vmul.f32 %v1620, %v2371
    %v2517 = vmul.f32 %v1621, %v2373
    %v2518 = vmul.f32 %v1622, %v2375
    %v2519 = vmul.f32 %v1623, %v2377
    %v2520 = vmul.f32 %v1624, %v2379
    %v2521 = vmul.f32 %v1625, %v2381
    %v2522 = vmul.f32 %v1626, %v2383
    %v2523 = vmul.f32 %v1627, %v2385
    %v2524 = vmul.f32 %v1628, %v2387
    %v2525 = vmul.f32 %v1629, %v2389
    %v2526 = vmul.f32 %v1630, %v2391
    %v2527 = vmul.f32 %v1631, %v2393
    %v2528 = vmul.f32 %v1632, %v2395
    %v2529 = vmul.f32 %v1633, %v2397
    %v2530 = vmul.f32 %v1634, %v2399
    %v2531 = vmul.f32 %v1635, %v2401
    %v2532 = vmul.f32 %v1636, %v2403
    %v2533 = vmul.f32 %v1637, %v2405
    %v2534 = vpack.c.bf16 %v2408, %v2406
    %v2535 = vpack.c.bf16 %v2409, %v2407
    %v2536 = vpack.c.bf16 %v2412, %v2410
    %v2537 = vpack.c.bf16 %v2413, %v2411
    %v2538 = vpack.c.bf16 %v2416, %v2414
    %v2539 = vpack.c.bf16 %v2417, %v2415
    %v2540 = vpack.c.bf16 %v2420, %v2418
    %v2541 = vpack.c.bf16 %v2421, %v2419
    %v2542 = vpack.c.bf16 %v2424, %v2422
    %v2543 = vpack.c.bf16 %v2425, %v2423
    %v2544 = vpack.c.bf16 %v2428, %v2426
    %v2545 = vpack.c.bf16 %v2429, %v2427
    %v2546 = vpack.c.bf16 %v2432, %v2430
    %v2547 = vpack.c.bf16 %v2433, %v2431
    %v2548 = vpack.c.bf16 %v2436, %v2434
    %v2549 = vpack.c.bf16 %v2437, %v2435
    %v2550 = vpack.c.bf16 %v2440, %v2438
    %v2551 = vpack.c.bf16 %v2441, %v2439
    %v2552 = vpack.c.bf16 %v2444, %v2442
    %v2553 = vpack.c.bf16 %v2445, %v2443
    %v2554 = vpack.c.bf16 %v2448, %v2446
    %v2555 = vpack.c.bf16 %v2449, %v2447
    %v2556 = vpack.c.bf16 %v2452, %v2450
    %v2557 = vpack.c.bf16 %v2453, %v2451
    %v2558 = vpack.c.bf16 %v2456, %v2454
    %v2559 = vpack.c.bf16 %v2457, %v2455
    %v2560 = vpack.c.bf16 %v2460, %v2458
    %v2561 = vpack.c.bf16 %v2461, %v2459
    %v2562 = vpack.c.bf16 %v2464, %v2462
    %v2563 = vpack.c.bf16 %v2465, %v2463
    %v2564 = vpack.c.bf16 %v2468, %v2466
    %v2565 = vpack.c.bf16 %v2469, %v2467
    %v2566 = vpack.c.bf16 %v2472, %v2470
    %v2567 = vpack.c.bf16 %v2473, %v2471
    %v2568 = vpack.c.bf16 %v2476, %v2474
    %v2569 = vpack.c.bf16 %v2477, %v2475
    %v2570 = vpack.c.bf16 %v2480, %v2478
    %v2571 = vpack.c.bf16 %v2481, %v2479
    %v2572 = vpack.c.bf16 %v2484, %v2482
    %v2573 = vpack.c.bf16 %v2485, %v2483
    %v2574 = vpack.c.bf16 %v2488, %v2486
    %v2575 = vpack.c.bf16 %v2489, %v2487
    %v2576 = vpack.c.bf16 %v2492, %v2490
    %v2577 = vpack.c.bf16 %v2493, %v2491
    %v2578 = vpack.c.bf16 %v2496, %v2494
    %v2579 = vpack.c.bf16 %v2497, %v2495
    %v2580 = vpack.c.bf16 %v2500, %v2498
    %v2581 = vpack.c.bf16 %v2501, %v2499
    %v2582 = vpack.c.bf16 %v2504, %v2502
    %v2583 = vpack.c.bf16 %v2505, %v2503
    %v2584 = vpack.c.bf16 %v2508, %v2506
    %v2585 = vpack.c.bf16 %v2509, %v2507
    %v2586 = vpack.c.bf16 %v2512, %v2510
    %v2587 = vpack.c.bf16 %v2513, %v2511
    %v2588 = vpack.c.bf16 %v2516, %v2514
    %v2589 = vpack.c.bf16 %v2517, %v2515
    %v2590 = vpack.c.bf16 %v2520, %v2518
    %v2591 = vpack.c.bf16 %v2521, %v2519
    %v2592 = vpack.c.bf16 %v2524, %v2522
    %v2593 = vpack.c.bf16 %v2525, %v2523
    %v2594 = vpack.c.bf16 %v2528, %v2526
    %v2595 = vpack.c.bf16 %v2529, %v2527
    %v2596 = vpack.c.bf16 %v2532, %v2530
    %v2597 = vpack.c.bf16 %v2533, %v2531
    %v2662 = vunpack.c.l.b16 %v2534
    %v2663 = vunpack.c.l.b16 %v2535
    %v2664 = vunpack.c.h.b16 %v2534
    %v2665 = vunpack.c.h.b16 %v2535
    %v2666 = vunpack.c.l.b16 %v2536
    %v2667 = vunpack.c.l.b16 %v2537
    %v2668 = vunpack.c.h.b16 %v2536
    %v2669 = vunpack.c.h.b16 %v2537
    %v2670 = vunpack.c.l.b16 %v2538
    %v2671 = vunpack.c.l.b16 %v2539
    %v2672 = vunpack.c.h.b16 %v2538
    %v2673 = vunpack.c.h.b16 %v2539
    %v2674 = vunpack.c.l.b16 %v2540
    %v2675 = vunpack.c.l.b16 %v2541
    %v2676 = vunpack.c.h.b16 %v2540
    %v2677 = vunpack.c.h.b16 %v2541
    %v2678 = vunpack.c.l.b16 %v2542
    %v2679 = vunpack.c.l.b16 %v2543
    %v2680 = vunpack.c.h.b16 %v2542
    %v2681 = vunpack.c.h.b16 %v2543
    %v2682 = vunpack.c.l.b16 %v2544
    %v2683 = vunpack.c.l.b16 %v2545
    %v2684 = vunpack.c.h.b16 %v2544
    %v2685 = vunpack.c.h.b16 %v2545
    %v2686 = vunpack.c.l.b16 %v2546
    %v2687 = vunpack.c.l.b16 %v2547
    %v2688 = vunpack.c.h.b16 %v2546
    %v2689 = vunpack.c.h.b16 %v2547
    %v2690 = vunpack.c.l.b16 %v2548
    %v2691 = vunpack.c.l.b16 %v2549
    %v2692 = vunpack.c.h.b16 %v2548
    %v2693 = vunpack.c.h.b16 %v2549
    %v2694 = vunpack.c.l.b16 %v2550
    %v2695 = vunpack.c.l.b16 %v2551
    %v2696 = vunpack.c.h.b16 %v2550
    %v2697 = vunpack.c.h.b16 %v2551
    %v2698 = vunpack.c.l.b16 %v2552
    %v2699 = vunpack.c.l.b16 %v2553
    %v2700 = vunpack.c.h.b16 %v2552
    %v2701 = vunpack.c.h.b16 %v2553
    %v2702 = vunpack.c.l.b16 %v2554
    %v2703 = vunpack.c.l.b16 %v2555
    %v2704 = vunpack.c.h.b16 %v2554
    %v2705 = vunpack.c.h.b16 %v2555
    %v2706 = vunpack.c.l.b16 %v2556
    %v2707 = vunpack.c.l.b16 %v2557
    %v2708 = vunpack.c.h.b16 %v2556
    %v2709 = vunpack.c.h.b16 %v2557
    %v2710 = vunpack.c.l.b16 %v2558
    %v2711 = vunpack.c.l.b16 %v2559
    %v2712 = vunpack.c.h.b16 %v2558
    %v2713 = vunpack.c.h.b16 %v2559
    %v2714 = vunpack.c.l.b16 %v2560
    %v2715 = vunpack.c.l.b16 %v2561
    %v2716 = vunpack.c.h.b16 %v2560
    %v2717 = vunpack.c.h.b16 %v2561
    %v2718 = vunpack.c.l.b16 %v2562
    %v2719 = vunpack.c.l.b16 %v2563
    %v2720 = vunpack.c.h.b16 %v2562
    %v2721 = vunpack.c.h.b16 %v2563
    %v2722 = vunpack.c.l.b16 %v2564
    %v2723 = vunpack.c.l.b16 %v2565
    %v2724 = vunpack.c.h.b16 %v2564
    %v2725 = vunpack.c.h.b16 %v2565
    %v2726 = vunpack.c.l.b16 %v2566
    %v2727 = vunpack.c.l.b16 %v2567
    %v2728 = vunpack.c.h.b16 %v2566
    %v2729 = vunpack.c.h.b16 %v2567
    %v2730 = vunpack.c.l.b16 %v2568
    %v2731 = vunpack.c.l.b16 %v2569
    %v2732 = vunpack.c.h.b16 %v2568
    %v2733 = vunpack.c.h.b16 %v2569
    %v2734 = vunpack.c.l.b16 %v2570
    %v2735 = vunpack.c.l.b16 %v2571
    %v2736 = vunpack.c.h.b16 %v2570
    %v2737 = vunpack.c.h.b16 %v2571
    %v2738 = vunpack.c.l.b16 %v2572
    %v2739 = vunpack.c.l.b16 %v2573
    %v2740 = vunpack.c.h.b16 %v2572
    %v2741 = vunpack.c.h.b16 %v2573
    %v2742 = vunpack.c.l.b16 %v2574
    %v2743 = vunpack.c.l.b16 %v2575
    %v2744 = vunpack.c.h.b16 %v2574
    %v2745 = vunpack.c.h.b16 %v2575
    %v2746 = vunpack.c.l.b16 %v2576
    %v2747 = vunpack.c.l.b16 %v2577
    %v2748 = vunpack.c.h.b16 %v2576
    %v2749 = vunpack.c.h.b16 %v2577
    %v2750 = vunpack.c.l.b16 %v2578
    %v2751 = vunpack.c.l.b16 %v2579
    %v2752 = vunpack.c.h.b16 %v2578
    %v2753 = vunpack.c.h.b16 %v2579
    %v2754 = vunpack.c.l.b16 %v2580
    %v2755 = vunpack.c.l.b16 %v2581
    %v2756 = vunpack.c.h.b16 %v2580
    %v2757 = vunpack.c.h.b16 %v2581
    %v2758 = vunpack.c.l.b16 %v2582
    %v2759 = vunpack.c.l.b16 %v2583
    %v2760 = vunpack.c.h.b16 %v2582
    %v2761 = vunpack.c.h.b16 %v2583
    %v2762 = vunpack.c.l.b16 %v2584
    %v2763 = vunpack.c.l.b16 %v2585
    %v2764 = vunpack.c.h.b16 %v2584
    %v2765 = vunpack.c.h.b16 %v2585
    %v2766 = vunpack.c.l.b16 %v2586
    %v2767 = vunpack.c.l.b16 %v2587
    %v2768 = vunpack.c.h.b16 %v2586
    %v2769 = vunpack.c.h.b16 %v2587
    %v2770 = vunpack.c.l.b16 %v2588
    %v2771 = vunpack.c.l.b16 %v2589
    %v2772 = vunpack.c.h.b16 %v2588
    %v2773 = vunpack.c.h.b16 %v2589
    %v2774 = vunpack.c.l.b16 %v2590
    %v2775 = vunpack.c.l.b16 %v2591
    %v2776 = vunpack.c.h.b16 %v2590
    %v2777 = vunpack.c.h.b16 %v2591
    %v2778 = vunpack.c.l.b16 %v2592
    %v2779 = vunpack.c.l.b16 %v2593
    %v2780 = vunpack.c.h.b16 %v2592
    %v2781 = vunpack.c.h.b16 %v2593
    %v2782 = vunpack.c.l.b16 %v2594
    %v2783 = vunpack.c.l.b16 %v2595
    %v2784 = vunpack.c.h.b16 %v2594
    %v2785 = vunpack.c.h.b16 %v2595
    %v2786 = vunpack.c.l.b16 %v2596
    %v2787 = vunpack.c.l.b16 %v2597
    %v2788 = vunpack.c.h.b16 %v2596
    %v2789 = vunpack.c.h.b16 %v2597
    %v2790 = vpack.c.b16 %v2663, %v2662
    %v2791 = vpack.c.b16 %v2665, %v2664
    %v2792 = vpack.c.b16 %v2667, %v2666
    %v2793 = vpack.c.b16 %v2669, %v2668
    %v2794 = vpack.c.b16 %v2671, %v2670
    %v2795 = vpack.c.b16 %v2673, %v2672
    %v2796 = vpack.c.b16 %v2675, %v2674
    %v2797 = vpack.c.b16 %v2677, %v2676
    %v2798 = vpack.c.b16 %v2679, %v2678
    %v2799 = vpack.c.b16 %v2681, %v2680
    %v2800 = vpack.c.b16 %v2683, %v2682
    %v2801 = vpack.c.b16 %v2685, %v2684
    %v2802 = vpack.c.b16 %v2687, %v2686
    %v2803 = vpack.c.b16 %v2689, %v2688
    %v2804 = vpack.c.b16 %v2691, %v2690
    %v2805 = vpack.c.b16 %v2693, %v2692
    %v2806 = vpack.c.b16 %v2695, %v2694
    %v2807 = vpack.c.b16 %v2697, %v2696
    %v2808 = vpack.c.b16 %v2699, %v2698
    %v2809 = vpack.c.b16 %v2701, %v2700
    %v2810 = vpack.c.b16 %v2703, %v2702
    %v2811 = vpack.c.b16 %v2705, %v2704
    %v2812 = vpack.c.b16 %v2707, %v2706
    %v2813 = vpack.c.b16 %v2709, %v2708
    %v2814 = vpack.c.b16 %v2711, %v2710
    %v2815 = vpack.c.b16 %v2713, %v2712
    %v2816 = vpack.c.b16 %v2715, %v2714
    %v2817 = vpack.c.b16 %v2717, %v2716
    %v2818 = vpack.c.b16 %v2719, %v2718
    %v2819 = vpack.c.b16 %v2721, %v2720
    %v2820 = vpack.c.b16 %v2723, %v2722
    %v2821 = vpack.c.b16 %v2725, %v2724
    %v2822 = vpack.c.b16 %v2727, %v2726
    %v2823 = vpack.c.b16 %v2729, %v2728
    %v2824 = vpack.c.b16 %v2731, %v2730
    %v2825 = vpack.c.b16 %v2733, %v2732
    %v2826 = vpack.c.b16 %v2735, %v2734
    %v2827 = vpack.c.b16 %v2737, %v2736
    %v2828 = vpack.c.b16 %v2739, %v2738
    %v2829 = vpack.c.b16 %v2741, %v2740
    %v2830 = vpack.c.b16 %v2743, %v2742
    %v2831 = vpack.c.b16 %v2745, %v2744
    %v2832 = vpack.c.b16 %v2747, %v2746
    %v2833 = vpack.c.b16 %v2749, %v2748
    %v2834 = vpack.c.b16 %v2751, %v2750
    %v2835 = vpack.c.b16 %v2753, %v2752
    %v2836 = vpack.c.b16 %v2755, %v2754
    %v2837 = vpack.c.b16 %v2757, %v2756
    %v2838 = vpack.c.b16 %v2759, %v2758
    %v2839 = vpack.c.b16 %v2761, %v2760
    %v2840 = vpack.c.b16 %v2763, %v2762
    %v2841 = vpack.c.b16 %v2765, %v2764
    %v2842 = vpack.c.b16 %v2767, %v2766
    %v2843 = vpack.c.b16 %v2769, %v2768
    %v2844 = vpack.c.b16 %v2771, %v2770
    %v2845 = vpack.c.b16 %v2773, %v2772
    %v2846 = vpack.c.b16 %v2775, %v2774
    %v2847 = vpack.c.b16 %v2777, %v2776
    %v2848 = vpack.c.b16 %v2779, %v2778
    %v2849 = vpack.c.b16 %v2781, %v2780
    %v2850 = vpack.c.b16 %v2783, %v2782
    %v2851 = vpack.c.b16 %v2785, %v2784
    %v2852 = vpack.c.b16 %v2787, %v2786
    %v2853 = vpack.c.b16 %v2789, %v2788
    %2918 = vst [vmem:[#allocation7] sm:$0xff] %v2790
    %2919 = vst [vmem:[#allocation7 + $0x8] sm:$0xff] %v2791
    %2920 = vst [vmem:[#allocation7 + $0x10] sm:$0xff] %v2792
    %2921 = vst [vmem:[#allocation7 + $0x18] sm:$0xff] %v2793
    %2922 = vst [vmem:[#allocation7 + $0x20] sm:$0xff] %v2794
    %2923 = vst [vmem:[#allocation7 + $0x28] sm:$0xff] %v2795
    %2924 = vst [vmem:[#allocation7 + $0x30] sm:$0xff] %v2796
    %2925 = vst [vmem:[#allocation7 + $0x38] sm:$0xff] %v2797
    %2926 = vst [vmem:[#allocation7 + $0x40] sm:$0xff] %v2798
    %2927 = vst [vmem:[#allocation7 + $0x48] sm:$0xff] %v2799
    %2928 = vst [vmem:[#allocation7 + $0x50] sm:$0xff] %v2800
    %2929 = vst [vmem:[#allocation7 + $0x58] sm:$0xff] %v2801
    %2930 = vst [vmem:[#allocation7 + $0x60] sm:$0xff] %v2802
    %2931 = vst [vmem:[#allocation7 + $0x68] sm:$0xff] %v2803
    %2932 = vst [vmem:[#allocation7 + $0x70] sm:$0xff] %v2804
    %2933 = vst [vmem:[#allocation7 + $0x78] sm:$0xff] %v2805
    %2934 = vst [vmem:[#allocation7 + $0x80] sm:$0xff] %v2806
    %2935 = vst [vmem:[#allocation7 + $0x88] sm:$0xff] %v2807
    %2936 = vst [vmem:[#allocation7 + $0x90] sm:$0xff] %v2808
    %2937 = vst [vmem:[#allocation7 + $0x98] sm:$0xff] %v2809
    %2938 = vst [vmem:[#allocation7 + $0xa0] sm:$0xff] %v2810
    %2939 = vst [vmem:[#allocation7 + $0xa8] sm:$0xff] %v2811
    %2940 = vst [vmem:[#allocation7 + $0xb0] sm:$0xff] %v2812
    %2941 = vst [vmem:[#allocation7 + $0xb8] sm:$0xff] %v2813
    %2942 = vst [vmem:[#allocation7 + $0xc0] sm:$0xff] %v2814
    %2943 = vst [vmem:[#allocation7 + $0xc8] sm:$0xff] %v2815
    %2944 = vst [vmem:[#allocation7 + $0xd0] sm:$0xff] %v2816
    %2945 = vst [vmem:[#allocation7 + $0xd8] sm:$0xff] %v2817
    %2946 = vst [vmem:[#allocation7 + $0xe0] sm:$0xff] %v2818
    %2947 = vst [vmem:[#allocation7 + $0xe8] sm:$0xff] %v2819
    %2948 = vst [vmem:[#allocation7 + $0xf0] sm:$0xff] %v2820
    %2949 = vst [vmem:[#allocation7 + $0xf8] sm:$0xff] %v2821
    %2950 = vst [vmem:[#allocation7 + $0x100] sm:$0xff] %v2822
    %2951 = vst [vmem:[#allocation7 + $0x108] sm:$0xff] %v2823
    %2952 = vst [vmem:[#allocation7 + $0x110] sm:$0xff] %v2824
    %2953 = vst [vmem:[#allocation7 + $0x118] sm:$0xff] %v2825
    %2954 = vst [vmem:[#allocation7 + $0x120] sm:$0xff] %v2826
    %2955 = vst [vmem:[#allocation7 + $0x128] sm:$0xff] %v2827
    %2956 = vst [vmem:[#allocation7 + $0x130] sm:$0xff] %v2828
    %2957 = vst [vmem:[#allocation7 + $0x138] sm:$0xff] %v2829
    %2958 = vst [vmem:[#allocation7 + $0x140] sm:$0xff] %v2830
    %2959 = vst [vmem:[#allocation7 + $0x148] sm:$0xff] %v2831
    %2960 = vst [vmem:[#allocation7 + $0x150] sm:$0xff] %v2832
    %2961 = vst [vmem:[#allocation7 + $0x158] sm:$0xff] %v2833
    %2962 = vst [vmem:[#allocation7 + $0x160] sm:$0xff] %v2834
    %2963 = vst [vmem:[#allocation7 + $0x168] sm:$0xff] %v2835
    %2964 = vst [vmem:[#allocation7 + $0x170] sm:$0xff] %v2836
    %2965 = vst [vmem:[#allocation7 + $0x178] sm:$0xff] %v2837
    %2966 = vst [vmem:[#allocation7 + $0x180] sm:$0xff] %v2838
    %2967 = vst [vmem:[#allocation7 + $0x188] sm:$0xff] %v2839
    %2968 = vst [vmem:[#allocation7 + $0x190] sm:$0xff] %v2840
    %2969 = vst [vmem:[#allocation7 + $0x198] sm:$0xff] %v2841
    %2970 = vst [vmem:[#allocation7 + $0x1a0] sm:$0xff] %v2842
    %2971 = vst [vmem:[#allocation7 + $0x1a8] sm:$0xff] %v2843
    %2972 = vst [vmem:[#allocation7 + $0x1b0] sm:$0xff] %v2844
    %2973 = vst [vmem:[#allocation7 + $0x1b8] sm:$0xff] %v2845
    %2974 = vst [vmem:[#allocation7 + $0x1c0] sm:$0xff] %v2846
    %2975 = vst [vmem:[#allocation7 + $0x1c8] sm:$0xff] %v2847
    %2976 = vst [vmem:[#allocation7 + $0x1d0] sm:$0xff] %v2848
    %2977 = vst [vmem:[#allocation7 + $0x1d8] sm:$0xff] %v2849
    %2978 = vst [vmem:[#allocation7 + $0x1e0] sm:$0xff] %v2850
    %2979 = vst [vmem:[#allocation7 + $0x1e8] sm:$0xff] %v2851
    %2980 = vst [vmem:[#allocation7 + $0x1f0] sm:$0xff] %v2852
    %2981 = vst [vmem:[#allocation7 + $0x1f8] sm:$0xff] %v2853
    // Predicated region
    $region18: #{conv_bn.1} parent=1 // pred_check
      _
    $region19: #{conv_bn.1} parent=1 // pred_check_branch
      %2983 = sbr.rel (0) target = $region21
    $region20: #{conv_bn.1} parent=1 // pred_region
      %s2985 = ssub.s32 8192, 8192
      %2986 = vsyncadd [#allocation4], %s2985
      %s2987 = sshll.u32 [#allocation7], 4
      %s2988 = int_to_ptr.vmem [resolvable:$true] %s2987
      %2993 = dma.vmem_to_hbm [thread:$0]  %s2988, 8192, %s2, [#allocation4], 128, 128, 8
    $region21: #{conv_bn.1} parent=1 // pred_fallthru
      _
    // Predicated region
    $region22: #{conv_bn.1} parent=1 // pred_check
      _
    $region23: #{conv_bn.1} parent=1 // pred_check_branch
      %2995 = sbr.rel (0) target = $region25
    $region24: #{conv_bn.1} parent=1 // pred_region
      %2996 = dma.done [#allocation4], 8192
    $region25: #{conv_bn.1} parent=1 // pred_fallthru
      _
    %2997 = vsyncpa [#allocation3], 1
    %2998 = vsyncpa [#allocation6], 1
    %2999 = vsyncpa [#allocation4], 1

</llo_original>
